<compile_context>
chip_gen: v7x
topology: tpu7x:2x2x1
jax: 0.10.0
libtpu: 0.0.40
codegen_flags: <defaults>
</compile_context>

<pallas_src>
import functools
import math

import jax
import jax.numpy as jnp
from jax import lax
from jax.experimental import pallas as pl
from jax.experimental.pallas import tpu as pltpu


TAIL_WINDOW = 49   # the module gates on softmax over the last 49 keys
TOP_K = 5


def _cross_attn_kernel(q_in, k_in, v_in,
                       wq, bq, wk, bk, wv, bv, wo, bo,
                       out_ref, *, bt, h, d_k, d_v, d_model, threshold):
    """One batch block (bt elements) per grid step."""
    nq = q_in.shape[1]
    nk = k_in.shape[1]
    f32 = jnp.float32
    bf16 = jnp.bfloat16

    # ---- packed Q/K/V projections: one 2-D MXU matmul each over bt*seq rows ----
    q2 = q_in[...].reshape(bt * nq, d_model).astype(bf16)
    k2 = k_in[...].reshape(bt * nk, d_model).astype(bf16)
    v2 = v_in[...].reshape(bt * nk, d_model).astype(bf16)

    # 1/sqrt(d_k) is already folded into wq/bq on the host.  Accumulate in f32,
    # add the f32 bias, then drop back to bf16 for the attention dots.
    q3 = (jnp.dot(q2, wq[...], preferred_element_type=f32) + bq[...]
          ).reshape(bt, nq, h * d_k).astype(bf16)
    k3 = (jnp.dot(k2, wk[...], preferred_element_type=f32) + bk[...]
          ).reshape(bt, nk, h * d_k).astype(bf16)
    v3 = (jnp.dot(v2, wv[...], preferred_element_type=f32) + bv[...]
          ).reshape(bt, nk, h * d_v).astype(bf16)

    split = max(nk - TAIL_WINDOW, 0)   # keys [0, split) can get gated away
    neg = -1e30                        # exp() underflows to exactly 0
    col = lax.broadcasted_iota(jnp.int32, (bt, nq, nk), 2)
    in_tail = col >= split

    dn_qk = (((2,), (2,)), ((0,), (0,)))   # contract d_k, batch over bt
    dn_av = (((2,), (1,)), ((0,), (0,)))   # contract nk,  batch over bt

    # Per-head attention core.  The unrolled Python loop over the (static,
    # small) head count emits the same per-(batch, head) MXU op sequence as a
    # (bt, h)-batched dot_general, but avoids 4-D activation relayouts.
    ov_heads = []
    for i in range(h):
        q_h = q3[:, :, i * d_k:(i + 1) * d_k]          # (bt, nq, d_k) bf16
        k_h = k3[:, :, i * d_k:(i + 1) * d_k]          # (bt, nk, d_k) bf16
        v_h = v3[:, :, i * d_v:(i + 1) * d_v]          # (bt, nk, d_v) bf16

        att = lax.dot_general(q_h, k_h, dn_qk,
                              preferred_element_type=f32)     # (bt, nq, nk) f32

        # Softmax pieces over the 49-key tail — reused by the gate AND the
        # final softmax (no double exponentiation of the tail columns).
        tail_att = jnp.where(in_tail, att, neg)
        t_max = jnp.max(tail_att, axis=-1, keepdims=True)
        t_exp = jnp.exp(tail_att - t_max)                  # exactly 0 off-tail
        t_den = jnp.sum(t_exp, axis=-1, keepdims=True)

        if split > 0:
            # top-5 gate, division-free: sum(top5(exp)) > thr * sum(exp)
            # (exact same decision as sum(top5(softmax)) > thr, no division).
            top_sum = jnp.zeros((bt, nq, 1), f32)
            rem = t_exp
            for _ in range(TOP_K):
                m = jnp.max(rem, axis=-1, keepdims=True)
                top_sum = top_sum + m
                # exp values are > 0, so -1.0 safely marks the removed maximum.
                # TODO(synk): exact duplicate scores tie-break differently from torch.topk.
                rem = jnp.where(rem == m, -1.0, rem)
            gate = top_sum > threshold * t_den             # (bt, nq, 1) bool

            # Non-tail ("head region") part of the softmax; gated rows blocked.
            head_att = jnp.where(jnp.logical_or(in_tail, gate), neg, att)
            h_max = jnp.max(head_att, axis=-1, keepdims=True)
            row_max = jnp.maximum(t_max, h_max)
            h_exp = jnp.exp(head_att - row_max)            # 0 in the tail region
            t_scale = jnp.exp(t_max - row_max)
            p = h_exp + t_exp * t_scale                    # tail exps reused
            den = jnp.sum(h_exp, axis=-1, keepdims=True) + t_den * t_scale
        else:
            p, den = t_exp, t_den
        # TODO(synk): the training-time `threshold.data += mask.sum()*1e-8` buffer
        #   update is a stateful side effect that does not change this forward's
        #   output; not modeled.  nn.Dropout is identity at inference; omitted.
        #   attention_mask / attention_weights are None in this use; not wired in.

        p = p * pl.reciprocal(den, approx=True)
        ov_heads.append(
            lax.dot_general(p.astype(bf16), v_h, dn_av,
                            preferred_element_type=f32).reshape(bt * nq, d_v))

    # Heads back onto the lane axis -> single fc_o matmul over bt*nq rows.
    ov = jnp.concatenate(ov_heads, axis=-1).astype(bf16)        # (bt*nq, h*d_v)
    out = jnp.dot(ov, wo[...], preferred_element_type=f32) + bo[...]
    out_ref[...] = out.reshape(bt, nq, d_model).astype(out_ref.dtype)


def _choose_block_b(batch, nq, target_rows=256):
    """Batch block: fill the MXU M dim for the packed matmuls while keeping
    >= 2 grid steps (both v7x TensorCores busy) whenever the batch allows."""
    divisors = [d for d in range(1, batch + 1) if batch % d == 0]
    if batch >= 2:
        divisors = [d for d in divisors if batch // d >= 2]
    for d in divisors:
        if d * nq >= target_rows:
            return d
    return divisors[-1]


def scaled_dot_product_attention(queries, keys, values, params,
                                 *, h, d_k, d_v, d_model, threshold=0.1,
                                 block_b=None):
    B, nq, _ = queries.shape
    nk = keys.shape[1]
    # TODO(synk): for nk < 49 the PyTorch slice `att[..., nk-49:]` wraps via
    #   negative indexing; that variant is not modeled here.
    assert nk >= TAIL_WINDOW and min(nk, TAIL_WINDOW) >= TOP_K

    wq, bq, wk, bk, wv, bv, wo, bo = params

    # Host-side constant folding / layout plumbing (free, outside the kernel):
    #  - 1/sqrt(d_k) folded into the Q projection weights & bias,
    #  - weights pre-cast to bf16 so every MXU dot sees bf16 operands,
    #  - biases kept f32 and reshaped into broadcastable rows.
    scale = 1.0 / math.sqrt(d_k)
    wq_b = (wq * scale).astype(jnp.bfloat16)
    wk_b = wk.astype(jnp.bfloat16)
    wv_b = wv.astype(jnp.bfloat16)
    wo_b = wo.astype(jnp.bfloat16)
    bq_2 = (bq * scale).reshape(1, h * d_k).astype(jnp.float32)
    bk_2 = bk.reshape(1, h * d_k).astype(jnp.float32)
    bv_2 = bv.reshape(1, h * d_v).astype(jnp.float32)
    bo_2 = bo.reshape(1, d_model).astype(jnp.float32)

    if block_b is None:
        block_b = _choose_block_b(B, nq)
    assert B % block_b == 0
    grid = (B // block_b,)

    def batch_spec(seq, feat):
        return pl.BlockSpec((block_b, seq, feat), lambda b: (b, 0, 0))

    def const_spec(arr):
        # Grid-invariant weights/biases.  (Single-buffering them with
        # pipeline_mode=pl.Buffered(1) would halve their VMEM; negligible at
        # these sizes so left at the default.)
        return pl.BlockSpec(arr.shape, lambda b, n=arr.ndim: (0,) * n)

    kernel = functools.partial(_cross_attn_kernel, bt=block_b, h=h, d_k=d_k,
                               d_v=d_v, d_model=d_model,
                               threshold=float(threshold))

    return pl.pallas_call(
        kernel,
        out_shape=jax.ShapeDtypeStruct((B, nq, d_model), queries.dtype),
        grid_spec=pltpu.PrefetchScalarGridSpec(
            num_scalar_prefetch=0,
            grid=grid,
            in_specs=[
                batch_spec(nq, d_model),   # queries
                batch_spec(nk, d_model),   # keys
                batch_spec(nk, d_model),   # values
                const_spec(wq_b), const_spec(bq_2),
                const_spec(wk_b), const_spec(bk_2),
                const_spec(wv_b), const_spec(bv_2),
                const_spec(wo_b), const_spec(bo_2),
            ],
            out_specs=batch_spec(nq, d_model),
        ),
        compiler_params=pltpu.CompilerParams(
            dimension_semantics=("parallel",)),
    )(queries, keys, values, wq_b, bq_2, wk_b, bk_2, wv_b, bv_2, wo_b, bo_2)


def init_linear(key, fan_in, fan_out, dtype=jnp.float32):
    # Matches torch nn.Linear default init: U(-1/sqrt(fan_in), 1/sqrt(fan_in)).
    kw, kb = jax.random.split(key)
    bound = 1.0 / math.sqrt(fan_in)
    w = jax.random.uniform(kw, (fan_in, fan_out), dtype, minval=-bound, maxval=bound)
    b = jax.random.uniform(kb, (fan_out,), dtype, minval=-bound, maxval=bound)
    return w, b


def reference_attention(queries, keys, values, params,
                        *, h, d_k, d_v, d_model, threshold=0.1):
    """Pure-JAX f32 reference mirroring the PyTorch forward (dropout=eval)."""
    wq, bq, wk, bk, wv, bv, wo, bo = params
    B, nq, _ = queries.shape
    nk = keys.shape[1]
    q = (queries @ wq + bq).reshape(B, nq, h, d_k).transpose(0, 2, 1, 3)
    k = (keys @ wk + bk).reshape(B, nk, h, d_k).transpose(0, 2, 3, 1)
    v = (values @ wv + bv).reshape(B, nk, h, d_v).transpose(0, 2, 1, 3)
    att = jnp.matmul(q, k) / math.sqrt(d_k)                  # (B, h, nq, nk)

    split = nk - TAIL_WINDOW
    tail_soft = jax.nn.softmax(att[..., split:], axis=-1)
    top5 = lax.top_k(tail_soft, TOP_K)[0].sum(-1)            # (B, h, nq)
    gate = top5 > threshold
    col = jnp.arange(nk)
    att = jnp.where(gate[..., None] & (col < max(split, 0)), -jnp.inf, att)

    att = jax.nn.softmax(att, axis=-1)
    out = jnp.matmul(att, v).transpose(0, 2, 1, 3).reshape(B, nq, h * d_v)
    return out @ wo + bo


if __name__ == "__main__":
    d_model, d_k, d_v, h = 32, 8, 8, 4
    B, nq, nk = 4, 8, 56   # cross-attention: nk > 49 exercises the gating path

    key = jax.random.PRNGKey(0)
    kq, kk, kv, ko, kx1, kx2, kx3 = jax.random.split(key, 7)

    params = (*init_linear(kq, d_model, h * d_k),
              *init_linear(kk, d_model, h * d_k),
              *init_linear(kv, d_model, h * d_v),
              *init_linear(ko, h * d_v, d_model))

    queries = jax.random.normal(kx1, (B, nq, d_model), jnp.float32)
    keys = jax.random.normal(kx2, (B, nk, d_model), jnp.float32)
    values = jax.random.normal(kx3, (B, nk, d_model), jnp.float32)

    out = scaled_dot_product_attention(queries, keys, values, params,
                                       h=h, d_k=d_k, d_v=d_v, d_model=d_model)
    out = jax.block_until_ready(out)

    ref = reference_attention(queries, keys, values, params,
                              h=h, d_k=d_k, d_v=d_v, d_model=d_model)
    assert out.shape == (B, nq, d_model)
    # Tolerance covers bf16 MXU operands (f32 accumulation) and the approx
    # (EUP) reciprocal in the softmax normalization.
    assert jnp.allclose(out, ref, atol=5e-3, rtol=5e-3), "mismatch vs reference"

    print("KERNEL_OK")
</pallas_src>

<mosaic_0001>
module attributes {stable_mosaic.version = 11 : i64} {
  func.func @_cross_attn_kernel(%arg0: i32, %arg1: memref<2x8x32xf32, #tpu.memory_space<vmem>>, %arg2: memref<2x56x32xf32, #tpu.memory_space<vmem>>, %arg3: memref<2x56x32xf32, #tpu.memory_space<vmem>>, %arg4: memref<32x32xbf16, #tpu.memory_space<vmem>>, %arg5: memref<1x32xf32, #tpu.memory_space<vmem>>, %arg6: memref<32x32xbf16, #tpu.memory_space<vmem>>, %arg7: memref<1x32xf32, #tpu.memory_space<vmem>>, %arg8: memref<32x32xbf16, #tpu.memory_space<vmem>>, %arg9: memref<1x32xf32, #tpu.memory_space<vmem>>, %arg10: memref<32x32xbf16, #tpu.memory_space<vmem>>, %arg11: memref<1x32xf32, #tpu.memory_space<vmem>>, %arg12: memref<2x8x32xf32, #tpu.memory_space<vmem>>) attributes {dimension_semantics = [#tpu.dimension_semantics<parallel>], iteration_bounds = array<i64: 2>, scalar_prefetch = 0 : i64, scratch_operands = 0 : i64, tpu.core_type = #tpu.core_type<tc>, window_params = [{transform_indices = @transform_0, window_bounds = array<i64: 2, 8, 32>}, {transform_indices = @transform_1, window_bounds = array<i64: 2, 56, 32>}, {transform_indices = @transform_2, window_bounds = array<i64: 2, 56, 32>}, {pipeline_mode = #tpu.pipeline_mode<synchronous>, transform_indices = @transform_3, window_bounds = array<i64: 32, 32>}, {pipeline_mode = #tpu.pipeline_mode<synchronous>, transform_indices = @transform_4, window_bounds = array<i64: 1, 32>}, {pipeline_mode = #tpu.pipeline_mode<synchronous>, transform_indices = @transform_5, window_bounds = array<i64: 32, 32>}, {pipeline_mode = #tpu.pipeline_mode<synchronous>, transform_indices = @transform_6, window_bounds = array<i64: 1, 32>}, {pipeline_mode = #tpu.pipeline_mode<synchronous>, transform_indices = @transform_7, window_bounds = array<i64: 32, 32>}, {pipeline_mode = #tpu.pipeline_mode<synchronous>, transform_indices = @transform_8, window_bounds = array<i64: 1, 32>}, {pipeline_mode = #tpu.pipeline_mode<synchronous>, transform_indices = @transform_9, window_bounds = array<i64: 32, 32>}, {pipeline_mode = #tpu.pipeline_mode<synchronous>, transform_indices = @transform_10, window_bounds = array<i64: 1, 32>}, {transform_indices = @transform_11, window_bounds = array<i64: 2, 8, 32>}]} {
    %c0 = arith.constant 0 : index
    %c0_0 = arith.constant 0 : index
    %c0_1 = arith.constant 0 : index
    %0 = vector.load %arg1[%c0, %c0_0, %c0_1] : memref<2x8x32xf32, #tpu.memory_space<vmem>>, vector<2x8x32xf32>
    %1 = vector.shape_cast %0 : vector<2x8x32xf32> to vector<16x32xf32>
    %2 = arith.truncf %1 : vector<16x32xf32> to vector<16x32xbf16>
    %c0_2 = arith.constant 0 : index
    %c0_3 = arith.constant 0 : index
    %c0_4 = arith.constant 0 : index
    %3 = vector.load %arg2[%c0_2, %c0_3, %c0_4] : memref<2x56x32xf32, #tpu.memory_space<vmem>>, vector<2x56x32xf32>
    %4 = vector.shape_cast %3 : vector<2x56x32xf32> to vector<112x32xf32>
    %5 = arith.truncf %4 : vector<112x32xf32> to vector<112x32xbf16>
    %c0_5 = arith.constant 0 : index
    %c0_6 = arith.constant 0 : index
    %c0_7 = arith.constant 0 : index
    %6 = vector.load %arg3[%c0_5, %c0_6, %c0_7] : memref<2x56x32xf32, #tpu.memory_space<vmem>>, vector<2x56x32xf32>
    %7 = vector.shape_cast %6 : vector<2x56x32xf32> to vector<112x32xf32>
    %8 = arith.truncf %7 : vector<112x32xf32> to vector<112x32xbf16>
    %c0_8 = arith.constant 0 : index
    %c0_9 = arith.constant 0 : index
    %9 = vector.load %arg4[%c0_8, %c0_9] : memref<32x32xbf16, #tpu.memory_space<vmem>>, vector<32x32xbf16>
    %cst = arith.constant dense<0.000000e+00> : vector<16x32xf32>
    %10 = tpu.matmul %2, %9, %cst {dimension_numbers = #tpu.dot_dimension_numbers<[1], [0], [0], [1], [0, 0, 1, 1], [], []>} : vector<16x32xbf16>, vector<32x32xbf16>, vector<16x32xf32> -> vector<16x32xf32>
    %c0_10 = arith.constant 0 : index
    %c0_11 = arith.constant 0 : index
    %11 = vector.load %arg5[%c0_10, %c0_11] : memref<1x32xf32, #tpu.memory_space<vmem>>, vector<1x32xf32>
    %12 = vector.broadcast %11 : vector<1x32xf32> to vector<16x32xf32>
    %13 = arith.addf %10, %12 : vector<16x32xf32>
    %14 = vector.shape_cast %13 : vector<16x32xf32> to vector<2x8x32xf32>
    %15 = arith.truncf %14 : vector<2x8x32xf32> to vector<2x8x32xbf16>
    %c0_12 = arith.constant 0 : index
    %c0_13 = arith.constant 0 : index
    %16 = vector.load %arg6[%c0_12, %c0_13] : memref<32x32xbf16, #tpu.memory_space<vmem>>, vector<32x32xbf16>
    %cst_14 = arith.constant dense<0.000000e+00> : vector<112x32xf32>
    %17 = tpu.matmul %5, %16, %cst_14 {dimension_numbers = #tpu.dot_dimension_numbers<[1], [0], [0], [1], [0, 0, 1, 1], [], []>} : vector<112x32xbf16>, vector<32x32xbf16>, vector<112x32xf32> -> vector<112x32xf32>
    %c0_15 = arith.constant 0 : index
    %c0_16 = arith.constant 0 : index
    %18 = vector.load %arg7[%c0_15, %c0_16] : memref<1x32xf32, #tpu.memory_space<vmem>>, vector<1x32xf32>
    %19 = vector.broadcast %18 : vector<1x32xf32> to vector<112x32xf32>
    %20 = arith.addf %17, %19 : vector<112x32xf32>
    %21 = vector.shape_cast %20 : vector<112x32xf32> to vector<2x56x32xf32>
    %22 = arith.truncf %21 : vector<2x56x32xf32> to vector<2x56x32xbf16>
    %c0_17 = arith.constant 0 : index
    %c0_18 = arith.constant 0 : index
    %23 = vector.load %arg8[%c0_17, %c0_18] : memref<32x32xbf16, #tpu.memory_space<vmem>>, vector<32x32xbf16>
    %cst_19 = arith.constant dense<0.000000e+00> : vector<112x32xf32>
    %24 = tpu.matmul %8, %23, %cst_19 {dimension_numbers = #tpu.dot_dimension_numbers<[1], [0], [0], [1], [0, 0, 1, 1], [], []>} : vector<112x32xbf16>, vector<32x32xbf16>, vector<112x32xf32> -> vector<112x32xf32>
    %c0_20 = arith.constant 0 : index
    %c0_21 = arith.constant 0 : index
    %25 = vector.load %arg9[%c0_20, %c0_21] : memref<1x32xf32, #tpu.memory_space<vmem>>, vector<1x32xf32>
    %26 = vector.broadcast %25 : vector<1x32xf32> to vector<112x32xf32>
    %27 = arith.addf %24, %26 : vector<112x32xf32>
    %28 = vector.shape_cast %27 : vector<112x32xf32> to vector<2x56x32xf32>
    %29 = arith.truncf %28 : vector<2x56x32xf32> to vector<2x56x32xbf16>
    %30 = tpu.iota {dimensions = array<i32: 2>} : vector<2x8x56xi32>
    %c7_i32 = arith.constant 7 : i32
    %31 = vector.broadcast %c7_i32 : i32 to vector<2x8x56xi32>
    %32 = arith.cmpi sge, %30, %31 : vector<2x8x56xi32>
    %33 = vector.extract_strided_slice %15 {offsets = [0, 0, 0], sizes = [2, 8, 8], strides = [1, 1, 1]} : vector<2x8x32xbf16> to vector<2x8x8xbf16>
    %34 = vector.extract_strided_slice %22 {offsets = [0, 0, 0], sizes = [2, 56, 8], strides = [1, 1, 1]} : vector<2x56x32xbf16> to vector<2x56x8xbf16>
    %35 = vector.extract_strided_slice %29 {offsets = [0, 0, 0], sizes = [2, 56, 8], strides = [1, 1, 1]} : vector<2x56x32xbf16> to vector<2x56x8xbf16>
    %cst_22 = arith.constant dense<0.000000e+00> : vector<2x8x56xf32>
    %36 = tpu.matmul %33, %34, %cst_22 {dimension_numbers = #tpu.dot_dimension_numbers<[2], [2], [1], [1], [0, 0, 0, 1, 1, 1], [0], [0]>} : vector<2x8x8xbf16>, vector<2x56x8xbf16>, vector<2x8x56xf32> -> vector<2x8x56xf32>
    %cst_23 = arith.constant -1.000000e+30 : f32
    %37 = vector.broadcast %cst_23 : f32 to vector<2x8x56xf32>
    %38 = arith.select %32, %36, %37 : vector<2x8x56xi1>, vector<2x8x56xf32>
    %cst_24 = arith.constant dense<0xFF800000> : vector<2x8xf32>
    %39 = vector.multi_reduction <maximumf>, %38, %cst_24 [2] : vector<2x8x56xf32> to vector<2x8xf32>
    %40 = vector.shape_cast %39 : vector<2x8xf32> to vector<2x8x1xf32>
    %41 = vector.broadcast %40 : vector<2x8x1xf32> to vector<2x8x56xf32>
    %42 = arith.subf %38, %41 : vector<2x8x56xf32>
    %43 = math.exp %42 : vector<2x8x56xf32>
    %cst_25 = arith.constant dense<0.000000e+00> : vector<2x8xf32>
    %44 = vector.multi_reduction <add>, %43, %cst_25 [2] : vector<2x8x56xf32> to vector<2x8xf32>
    %45 = vector.shape_cast %44 : vector<2x8xf32> to vector<2x8x1xf32>
    %cst_26 = arith.constant 0.000000e+00 : f32
    %46 = vector.broadcast %cst_26 : f32 to vector<2x8x1xf32>
    %cst_27 = arith.constant dense<0xFF800000> : vector<2x8xf32>
    %47 = vector.multi_reduction <maximumf>, %43, %cst_27 [2] : vector<2x8x56xf32> to vector<2x8xf32>
    %48 = vector.shape_cast %47 : vector<2x8xf32> to vector<2x8x1xf32>
    %49 = arith.addf %46, %48 : vector<2x8x1xf32>
    %50 = vector.broadcast %48 : vector<2x8x1xf32> to vector<2x8x56xf32>
    %51 = arith.cmpf oeq, %43, %50 : vector<2x8x56xf32>
    %cst_28 = arith.constant -1.000000e+00 : f32
    %52 = vector.broadcast %cst_28 : f32 to vector<2x8x56xf32>
    %53 = arith.select %51, %52, %43 : vector<2x8x56xi1>, vector<2x8x56xf32>
    %cst_29 = arith.constant dense<0xFF800000> : vector<2x8xf32>
    %54 = vector.multi_reduction <maximumf>, %53, %cst_29 [2] : vector<2x8x56xf32> to vector<2x8xf32>
    %55 = vector.shape_cast %54 : vector<2x8xf32> to vector<2x8x1xf32>
    %56 = arith.addf %49, %55 : vector<2x8x1xf32>
    %57 = vector.broadcast %55 : vector<2x8x1xf32> to vector<2x8x56xf32>
    %58 = arith.cmpf oeq, %53, %57 : vector<2x8x56xf32>
    %cst_30 = arith.constant -1.000000e+00 : f32
    %59 = vector.broadcast %cst_30 : f32 to vector<2x8x56xf32>
    %60 = arith.select %58, %59, %53 : vector<2x8x56xi1>, vector<2x8x56xf32>
    %cst_31 = arith.constant dense<0xFF800000> : vector<2x8xf32>
    %61 = vector.multi_reduction <maximumf>, %60, %cst_31 [2] : vector<2x8x56xf32> to vector<2x8xf32>
    %62 = vector.shape_cast %61 : vector<2x8xf32> to vector<2x8x1xf32>
    %63 = arith.addf %56, %62 : vector<2x8x1xf32>
    %64 = vector.broadcast %62 : vector<2x8x1xf32> to vector<2x8x56xf32>
    %65 = arith.cmpf oeq, %60, %64 : vector<2x8x56xf32>
    %cst_32 = arith.constant -1.000000e+00 : f32
    %66 = vector.broadcast %cst_32 : f32 to vector<2x8x56xf32>
    %67 = arith.select %65, %66, %60 : vector<2x8x56xi1>, vector<2x8x56xf32>
    %cst_33 = arith.constant dense<0xFF800000> : vector<2x8xf32>
    %68 = vector.multi_reduction <maximumf>, %67, %cst_33 [2] : vector<2x8x56xf32> to vector<2x8xf32>
    %69 = vector.shape_cast %68 : vector<2x8xf32> to vector<2x8x1xf32>
    %70 = arith.addf %63, %69 : vector<2x8x1xf32>
    %71 = vector.broadcast %69 : vector<2x8x1xf32> to vector<2x8x56xf32>
    %72 = arith.cmpf oeq, %67, %71 : vector<2x8x56xf32>
    %cst_34 = arith.constant -1.000000e+00 : f32
    %73 = vector.broadcast %cst_34 : f32 to vector<2x8x56xf32>
    %74 = arith.select %72, %73, %67 : vector<2x8x56xi1>, vector<2x8x56xf32>
    %cst_35 = arith.constant dense<0xFF800000> : vector<2x8xf32>
    %75 = vector.multi_reduction <maximumf>, %74, %cst_35 [2] : vector<2x8x56xf32> to vector<2x8xf32>
    %76 = vector.shape_cast %75 : vector<2x8xf32> to vector<2x8x1xf32>
    %77 = arith.addf %70, %76 : vector<2x8x1xf32>
    %cst_36 = arith.constant 1.000000e-01 : f32
    %78 = vector.broadcast %cst_36 : f32 to vector<2x8x1xf32>
    %79 = arith.mulf %78, %45 : vector<2x8x1xf32>
    %80 = arith.cmpf ogt, %77, %79 : vector<2x8x1xf32>
    %81 = vector.broadcast %80 : vector<2x8x1xi1> to vector<2x8x56xi1>
    %82 = arith.ori %32, %81 : vector<2x8x56xi1>
    %cst_37 = arith.constant -1.000000e+30 : f32
    %83 = vector.broadcast %cst_37 : f32 to vector<2x8x56xf32>
    %84 = arith.select %82, %83, %36 : vector<2x8x56xi1>, vector<2x8x56xf32>
    %cst_38 = arith.constant dense<0xFF800000> : vector<2x8xf32>
    %85 = vector.multi_reduction <maximumf>, %84, %cst_38 [2] : vector<2x8x56xf32> to vector<2x8xf32>
    %86 = vector.shape_cast %85 : vector<2x8xf32> to vector<2x8x1xf32>
    %87 = arith.maximumf %40, %86 : vector<2x8x1xf32>
    %88 = vector.broadcast %87 : vector<2x8x1xf32> to vector<2x8x56xf32>
    %89 = arith.subf %84, %88 : vector<2x8x56xf32>
    %90 = math.exp %89 : vector<2x8x56xf32>
    %91 = arith.subf %40, %87 : vector<2x8x1xf32>
    %92 = math.exp %91 : vector<2x8x1xf32>
    %93 = vector.broadcast %92 : vector<2x8x1xf32> to vector<2x8x56xf32>
    %94 = arith.mulf %43, %93 : vector<2x8x56xf32>
    %95 = arith.addf %90, %94 : vector<2x8x56xf32>
    %cst_39 = arith.constant dense<0.000000e+00> : vector<2x8xf32>
    %96 = vector.multi_reduction <add>, %90, %cst_39 [2] : vector<2x8x56xf32> to vector<2x8xf32>
    %97 = vector.shape_cast %96 : vector<2x8xf32> to vector<2x8x1xf32>
    %98 = arith.mulf %45, %92 : vector<2x8x1xf32>
    %99 = arith.addf %97, %98 : vector<2x8x1xf32>
    %100 = tpu.reciprocal %99 {approx = true} : vector<2x8x1xf32> -> vector<2x8x1xf32>
    %101 = vector.broadcast %100 : vector<2x8x1xf32> to vector<2x8x56xf32>
    %102 = arith.mulf %95, %101 : vector<2x8x56xf32>
    %103 = arith.truncf %102 : vector<2x8x56xf32> to vector<2x8x56xbf16>
    %cst_40 = arith.constant dense<0.000000e+00> : vector<2x8x8xf32>
    %104 = tpu.matmul %103, %35, %cst_40 {dimension_numbers = #tpu.dot_dimension_numbers<[2], [1], [1], [2], [0, 0, 0, 1, 1, 2], [0], [0]>} : vector<2x8x56xbf16>, vector<2x56x8xbf16>, vector<2x8x8xf32> -> vector<2x8x8xf32>
    %105 = vector.shape_cast %104 : vector<2x8x8xf32> to vector<16x8xf32>
    %106 = vector.extract_strided_slice %15 {offsets = [0, 0, 8], sizes = [2, 8, 8], strides = [1, 1, 1]} : vector<2x8x32xbf16> to vector<2x8x8xbf16>
    %107 = vector.extract_strided_slice %22 {offsets = [0, 0, 8], sizes = [2, 56, 8], strides = [1, 1, 1]} : vector<2x56x32xbf16> to vector<2x56x8xbf16>
    %108 = vector.extract_strided_slice %29 {offsets = [0, 0, 8], sizes = [2, 56, 8], strides = [1, 1, 1]} : vector<2x56x32xbf16> to vector<2x56x8xbf16>
    %cst_41 = arith.constant dense<0.000000e+00> : vector<2x8x56xf32>
    %109 = tpu.matmul %106, %107, %cst_41 {dimension_numbers = #tpu.dot_dimension_numbers<[2], [2], [1], [1], [0, 0, 0, 1, 1, 1], [0], [0]>} : vector<2x8x8xbf16>, vector<2x56x8xbf16>, vector<2x8x56xf32> -> vector<2x8x56xf32>
    %cst_42 = arith.constant -1.000000e+30 : f32
    %110 = vector.broadcast %cst_42 : f32 to vector<2x8x56xf32>
    %111 = arith.select %32, %109, %110 : vector<2x8x56xi1>, vector<2x8x56xf32>
    %cst_43 = arith.constant dense<0xFF800000> : vector<2x8xf32>
    %112 = vector.multi_reduction <maximumf>, %111, %cst_43 [2] : vector<2x8x56xf32> to vector<2x8xf32>
    %113 = vector.shape_cast %112 : vector<2x8xf32> to vector<2x8x1xf32>
    %114 = vector.broadcast %113 : vector<2x8x1xf32> to vector<2x8x56xf32>
    %115 = arith.subf %111, %114 : vector<2x8x56xf32>
    %116 = math.exp %115 : vector<2x8x56xf32>
    %cst_44 = arith.constant dense<0.000000e+00> : vector<2x8xf32>
    %117 = vector.multi_reduction <add>, %116, %cst_44 [2] : vector<2x8x56xf32> to vector<2x8xf32>
    %118 = vector.shape_cast %117 : vector<2x8xf32> to vector<2x8x1xf32>
    %cst_45 = arith.constant 0.000000e+00 : f32
    %119 = vector.broadcast %cst_45 : f32 to vector<2x8x1xf32>
    %cst_46 = arith.constant dense<0xFF800000> : vector<2x8xf32>
    %120 = vector.multi_reduction <maximumf>, %116, %cst_46 [2] : vector<2x8x56xf32> to vector<2x8xf32>
    %121 = vector.shape_cast %120 : vector<2x8xf32> to vector<2x8x1xf32>
    %122 = arith.addf %119, %121 : vector<2x8x1xf32>
    %123 = vector.broadcast %121 : vector<2x8x1xf32> to vector<2x8x56xf32>
    %124 = arith.cmpf oeq, %116, %123 : vector<2x8x56xf32>
    %cst_47 = arith.constant -1.000000e+00 : f32
    %125 = vector.broadcast %cst_47 : f32 to vector<2x8x56xf32>
    %126 = arith.select %124, %125, %116 : vector<2x8x56xi1>, vector<2x8x56xf32>
    %cst_48 = arith.constant dense<0xFF800000> : vector<2x8xf32>
    %127 = vector.multi_reduction <maximumf>, %126, %cst_48 [2] : vector<2x8x56xf32> to vector<2x8xf32>
    %128 = vector.shape_cast %127 : vector<2x8xf32> to vector<2x8x1xf32>
    %129 = arith.addf %122, %128 : vector<2x8x1xf32>
    %130 = vector.broadcast %128 : vector<2x8x1xf32> to vector<2x8x56xf32>
    %131 = arith.cmpf oeq, %126, %130 : vector<2x8x56xf32>
    %cst_49 = arith.constant -1.000000e+00 : f32
    %132 = vector.broadcast %cst_49 : f32 to vector<2x8x56xf32>
    %133 = arith.select %131, %132, %126 : vector<2x8x56xi1>, vector<2x8x56xf32>
    %cst_50 = arith.constant dense<0xFF800000> : vector<2x8xf32>
    %134 = vector.multi_reduction <maximumf>, %133, %cst_50 [2] : vector<2x8x56xf32> to vector<2x8xf32>
    %135 = vector.shape_cast %134 : vector<2x8xf32> to vector<2x8x1xf32>
    %136 = arith.addf %129, %135 : vector<2x8x1xf32>
    %137 = vector.broadcast %135 : vector<2x8x1xf32> to vector<2x8x56xf32>
    %138 = arith.cmpf oeq, %133, %137 : vector<2x8x56xf32>
    %cst_51 = arith.constant -1.000000e+00 : f32
    %139 = vector.broadcast %cst_51 : f32 to vector<2x8x56xf32>
    %140 = arith.select %138, %139, %133 : vector<2x8x56xi1>, vector<2x8x56xf32>
    %cst_52 = arith.constant dense<0xFF800000> : vector<2x8xf32>
    %141 = vector.multi_reduction <maximumf>, %140, %cst_52 [2] : vector<2x8x56xf32> to vector<2x8xf32>
    %142 = vector.shape_cast %141 : vector<2x8xf32> to vector<2x8x1xf32>
    %143 = arith.addf %136, %142 : vector<2x8x1xf32>
    %144 = vector.broadcast %142 : vector<2x8x1xf32> to vector<2x8x56xf32>
    %145 = arith.cmpf oeq, %140, %144 : vector<2x8x56xf32>
    %cst_53 = arith.constant -1.000000e+00 : f32
    %146 = vector.broadcast %cst_53 : f32 to vector<2x8x56xf32>
    %147 = arith.select %145, %146, %140 : vector<2x8x56xi1>, vector<2x8x56xf32>
    %cst_54 = arith.constant dense<0xFF800000> : vector<2x8xf32>
    %148 = vector.multi_reduction <maximumf>, %147, %cst_54 [2] : vector<2x8x56xf32> to vector<2x8xf32>
    %149 = vector.shape_cast %148 : vector<2x8xf32> to vector<2x8x1xf32>
    %150 = arith.addf %143, %149 : vector<2x8x1xf32>
    %cst_55 = arith.constant 1.000000e-01 : f32
    %151 = vector.broadcast %cst_55 : f32 to vector<2x8x1xf32>
    %152 = arith.mulf %151, %118 : vector<2x8x1xf32>
    %153 = arith.cmpf ogt, %150, %152 : vector<2x8x1xf32>
    %154 = vector.broadcast %153 : vector<2x8x1xi1> to vector<2x8x56xi1>
    %155 = arith.ori %32, %154 : vector<2x8x56xi1>
    %cst_56 = arith.constant -1.000000e+30 : f32
    %156 = vector.broadcast %cst_56 : f32 to vector<2x8x56xf32>
    %157 = arith.select %155, %156, %109 : vector<2x8x56xi1>, vector<2x8x56xf32>
    %cst_57 = arith.constant dense<0xFF800000> : vector<2x8xf32>
    %158 = vector.multi_reduction <maximumf>, %157, %cst_57 [2] : vector<2x8x56xf32> to vector<2x8xf32>
    %159 = vector.shape_cast %158 : vector<2x8xf32> to vector<2x8x1xf32>
    %160 = arith.maximumf %113, %159 : vector<2x8x1xf32>
    %161 = vector.broadcast %160 : vector<2x8x1xf32> to vector<2x8x56xf32>
    %162 = arith.subf %157, %161 : vector<2x8x56xf32>
    %163 = math.exp %162 : vector<2x8x56xf32>
    %164 = arith.subf %113, %160 : vector<2x8x1xf32>
    %165 = math.exp %164 : vector<2x8x1xf32>
    %166 = vector.broadcast %165 : vector<2x8x1xf32> to vector<2x8x56xf32>
    %167 = arith.mulf %116, %166 : vector<2x8x56xf32>
    %168 = arith.addf %163, %167 : vector<2x8x56xf32>
    %cst_58 = arith.constant dense<0.000000e+00> : vector<2x8xf32>
    %169 = vector.multi_reduction <add>, %163, %cst_58 [2] : vector<2x8x56xf32> to vector<2x8xf32>
    %170 = vector.shape_cast %169 : vector<2x8xf32> to vector<2x8x1xf32>
    %171 = arith.mulf %118, %165 : vector<2x8x1xf32>
    %172 = arith.addf %170, %171 : vector<2x8x1xf32>
    %173 = tpu.reciprocal %172 {approx = true} : vector<2x8x1xf32> -> vector<2x8x1xf32>
    %174 = vector.broadcast %173 : vector<2x8x1xf32> to vector<2x8x56xf32>
    %175 = arith.mulf %168, %174 : vector<2x8x56xf32>
    %176 = arith.truncf %175 : vector<2x8x56xf32> to vector<2x8x56xbf16>
    %cst_59 = arith.constant dense<0.000000e+00> : vector<2x8x8xf32>
    %177 = tpu.matmul %176, %108, %cst_59 {dimension_numbers = #tpu.dot_dimension_numbers<[2], [1], [1], [2], [0, 0, 0, 1, 1, 2], [0], [0]>} : vector<2x8x56xbf16>, vector<2x56x8xbf16>, vector<2x8x8xf32> -> vector<2x8x8xf32>
    %178 = vector.shape_cast %177 : vector<2x8x8xf32> to vector<16x8xf32>
    %179 = vector.extract_strided_slice %15 {offsets = [0, 0, 16], sizes = [2, 8, 8], strides = [1, 1, 1]} : vector<2x8x32xbf16> to vector<2x8x8xbf16>
    %180 = vector.extract_strided_slice %22 {offsets = [0, 0, 16], sizes = [2, 56, 8], strides = [1, 1, 1]} : vector<2x56x32xbf16> to vector<2x56x8xbf16>
    %181 = vector.extract_strided_slice %29 {offsets = [0, 0, 16], sizes = [2, 56, 8], strides = [1, 1, 1]} : vector<2x56x32xbf16> to vector<2x56x8xbf16>
    %cst_60 = arith.constant dense<0.000000e+00> : vector<2x8x56xf32>
    %182 = tpu.matmul %179, %180, %cst_60 {dimension_numbers = #tpu.dot_dimension_numbers<[2], [2], [1], [1], [0, 0, 0, 1, 1, 1], [0], [0]>} : vector<2x8x8xbf16>, vector<2x56x8xbf16>, vector<2x8x56xf32> -> vector<2x8x56xf32>
    %cst_61 = arith.constant -1.000000e+30 : f32
    %183 = vector.broadcast %cst_61 : f32 to vector<2x8x56xf32>
    %184 = arith.select %32, %182, %183 : vector<2x8x56xi1>, vector<2x8x56xf32>
    %cst_62 = arith.constant dense<0xFF800000> : vector<2x8xf32>
    %185 = vector.multi_reduction <maximumf>, %184, %cst_62 [2] : vector<2x8x56xf32> to vector<2x8xf32>
    %186 = vector.shape_cast %185 : vector<2x8xf32> to vector<2x8x1xf32>
    %187 = vector.broadcast %186 : vector<2x8x1xf32> to vector<2x8x56xf32>
    %188 = arith.subf %184, %187 : vector<2x8x56xf32>
    %189 = math.exp %188 : vector<2x8x56xf32>
    %cst_63 = arith.constant dense<0.000000e+00> : vector<2x8xf32>
    %190 = vector.multi_reduction <add>, %189, %cst_63 [2] : vector<2x8x56xf32> to vector<2x8xf32>
    %191 = vector.shape_cast %190 : vector<2x8xf32> to vector<2x8x1xf32>
    %cst_64 = arith.constant 0.000000e+00 : f32
    %192 = vector.broadcast %cst_64 : f32 to vector<2x8x1xf32>
    %cst_65 = arith.constant dense<0xFF800000> : vector<2x8xf32>
    %193 = vector.multi_reduction <maximumf>, %189, %cst_65 [2] : vector<2x8x56xf32> to vector<2x8xf32>
    %194 = vector.shape_cast %193 : vector<2x8xf32> to vector<2x8x1xf32>
    %195 = arith.addf %192, %194 : vector<2x8x1xf32>
    %196 = vector.broadcast %194 : vector<2x8x1xf32> to vector<2x8x56xf32>
    %197 = arith.cmpf oeq, %189, %196 : vector<2x8x56xf32>
    %cst_66 = arith.constant -1.000000e+00 : f32
    %198 = vector.broadcast %cst_66 : f32 to vector<2x8x56xf32>
    %199 = arith.select %197, %198, %189 : vector<2x8x56xi1>, vector<2x8x56xf32>
    %cst_67 = arith.constant dense<0xFF800000> : vector<2x8xf32>
    %200 = vector.multi_reduction <maximumf>, %199, %cst_67 [2] : vector<2x8x56xf32> to vector<2x8xf32>
    %201 = vector.shape_cast %200 : vector<2x8xf32> to vector<2x8x1xf32>
    %202 = arith.addf %195, %201 : vector<2x8x1xf32>
    %203 = vector.broadcast %201 : vector<2x8x1xf32> to vector<2x8x56xf32>
    %204 = arith.cmpf oeq, %199, %203 : vector<2x8x56xf32>
    %cst_68 = arith.constant -1.000000e+00 : f32
    %205 = vector.broadcast %cst_68 : f32 to vector<2x8x56xf32>
    %206 = arith.select %204, %205, %199 : vector<2x8x56xi1>, vector<2x8x56xf32>
    %cst_69 = arith.constant dense<0xFF800000> : vector<2x8xf32>
    %207 = vector.multi_reduction <maximumf>, %206, %cst_69 [2] : vector<2x8x56xf32> to vector<2x8xf32>
    %208 = vector.shape_cast %207 : vector<2x8xf32> to vector<2x8x1xf32>
    %209 = arith.addf %202, %208 : vector<2x8x1xf32>
    %210 = vector.broadcast %208 : vector<2x8x1xf32> to vector<2x8x56xf32>
    %211 = arith.cmpf oeq, %206, %210 : vector<2x8x56xf32>
    %cst_70 = arith.constant -1.000000e+00 : f32
    %212 = vector.broadcast %cst_70 : f32 to vector<2x8x56xf32>
    %213 = arith.select %211, %212, %206 : vector<2x8x56xi1>, vector<2x8x56xf32>
    %cst_71 = arith.constant dense<0xFF800000> : vector<2x8xf32>
    %214 = vector.multi_reduction <maximumf>, %213, %cst_71 [2] : vector<2x8x56xf32> to vector<2x8xf32>
    %215 = vector.shape_cast %214 : vector<2x8xf32> to vector<2x8x1xf32>
    %216 = arith.addf %209, %215 : vector<2x8x1xf32>
    %217 = vector.broadcast %215 : vector<2x8x1xf32> to vector<2x8x56xf32>
    %218 = arith.cmpf oeq, %213, %217 : vector<2x8x56xf32>
    %cst_72 = arith.constant -1.000000e+00 : f32
    %219 = vector.broadcast %cst_72 : f32 to vector<2x8x56xf32>
    %220 = arith.select %218, %219, %213 : vector<2x8x56xi1>, vector<2x8x56xf32>
    %cst_73 = arith.constant dense<0xFF800000> : vector<2x8xf32>
    %221 = vector.multi_reduction <maximumf>, %220, %cst_73 [2] : vector<2x8x56xf32> to vector<2x8xf32>
    %222 = vector.shape_cast %221 : vector<2x8xf32> to vector<2x8x1xf32>
    %223 = arith.addf %216, %222 : vector<2x8x1xf32>
    %cst_74 = arith.constant 1.000000e-01 : f32
    %224 = vector.broadcast %cst_74 : f32 to vector<2x8x1xf32>
    %225 = arith.mulf %224, %191 : vector<2x8x1xf32>
    %226 = arith.cmpf ogt, %223, %225 : vector<2x8x1xf32>
    %227 = vector.broadcast %226 : vector<2x8x1xi1> to vector<2x8x56xi1>
    %228 = arith.ori %32, %227 : vector<2x8x56xi1>
    %cst_75 = arith.constant -1.000000e+30 : f32
    %229 = vector.broadcast %cst_75 : f32 to vector<2x8x56xf32>
    %230 = arith.select %228, %229, %182 : vector<2x8x56xi1>, vector<2x8x56xf32>
    %cst_76 = arith.constant dense<0xFF800000> : vector<2x8xf32>
    %231 = vector.multi_reduction <maximumf>, %230, %cst_76 [2] : vector<2x8x56xf32> to vector<2x8xf32>
    %232 = vector.shape_cast %231 : vector<2x8xf32> to vector<2x8x1xf32>
    %233 = arith.maximumf %186, %232 : vector<2x8x1xf32>
    %234 = vector.broadcast %233 : vector<2x8x1xf32> to vector<2x8x56xf32>
    %235 = arith.subf %230, %234 : vector<2x8x56xf32>
    %236 = math.exp %235 : vector<2x8x56xf32>
    %237 = arith.subf %186, %233 : vector<2x8x1xf32>
    %238 = math.exp %237 : vector<2x8x1xf32>
    %239 = vector.broadcast %238 : vector<2x8x1xf32> to vector<2x8x56xf32>
    %240 = arith.mulf %189, %239 : vector<2x8x56xf32>
    %241 = arith.addf %236, %240 : vector<2x8x56xf32>
    %cst_77 = arith.constant dense<0.000000e+00> : vector<2x8xf32>
    %242 = vector.multi_reduction <add>, %236, %cst_77 [2] : vector<2x8x56xf32> to vector<2x8xf32>
    %243 = vector.shape_cast %242 : vector<2x8xf32> to vector<2x8x1xf32>
    %244 = arith.mulf %191, %238 : vector<2x8x1xf32>
    %245 = arith.addf %243, %244 : vector<2x8x1xf32>
    %246 = tpu.reciprocal %245 {approx = true} : vector<2x8x1xf32> -> vector<2x8x1xf32>
    %247 = vector.broadcast %246 : vector<2x8x1xf32> to vector<2x8x56xf32>
    %248 = arith.mulf %241, %247 : vector<2x8x56xf32>
    %249 = arith.truncf %248 : vector<2x8x56xf32> to vector<2x8x56xbf16>
    %cst_78 = arith.constant dense<0.000000e+00> : vector<2x8x8xf32>
    %250 = tpu.matmul %249, %181, %cst_78 {dimension_numbers = #tpu.dot_dimension_numbers<[2], [1], [1], [2], [0, 0, 0, 1, 1, 2], [0], [0]>} : vector<2x8x56xbf16>, vector<2x56x8xbf16>, vector<2x8x8xf32> -> vector<2x8x8xf32>
    %251 = vector.shape_cast %250 : vector<2x8x8xf32> to vector<16x8xf32>
    %252 = vector.extract_strided_slice %15 {offsets = [0, 0, 24], sizes = [2, 8, 8], strides = [1, 1, 1]} : vector<2x8x32xbf16> to vector<2x8x8xbf16>
    %253 = vector.extract_strided_slice %22 {offsets = [0, 0, 24], sizes = [2, 56, 8], strides = [1, 1, 1]} : vector<2x56x32xbf16> to vector<2x56x8xbf16>
    %254 = vector.extract_strided_slice %29 {offsets = [0, 0, 24], sizes = [2, 56, 8], strides = [1, 1, 1]} : vector<2x56x32xbf16> to vector<2x56x8xbf16>
    %cst_79 = arith.constant dense<0.000000e+00> : vector<2x8x56xf32>
    %255 = tpu.matmul %252, %253, %cst_79 {dimension_numbers = #tpu.dot_dimension_numbers<[2], [2], [1], [1], [0, 0, 0, 1, 1, 1], [0], [0]>} : vector<2x8x8xbf16>, vector<2x56x8xbf16>, vector<2x8x56xf32> -> vector<2x8x56xf32>
    %cst_80 = arith.constant -1.000000e+30 : f32
    %256 = vector.broadcast %cst_80 : f32 to vector<2x8x56xf32>
    %257 = arith.select %32, %255, %256 : vector<2x8x56xi1>, vector<2x8x56xf32>
    %cst_81 = arith.constant dense<0xFF800000> : vector<2x8xf32>
    %258 = vector.multi_reduction <maximumf>, %257, %cst_81 [2] : vector<2x8x56xf32> to vector<2x8xf32>
    %259 = vector.shape_cast %258 : vector<2x8xf32> to vector<2x8x1xf32>
    %260 = vector.broadcast %259 : vector<2x8x1xf32> to vector<2x8x56xf32>
    %261 = arith.subf %257, %260 : vector<2x8x56xf32>
    %262 = math.exp %261 : vector<2x8x56xf32>
    %cst_82 = arith.constant dense<0.000000e+00> : vector<2x8xf32>
    %263 = vector.multi_reduction <add>, %262, %cst_82 [2] : vector<2x8x56xf32> to vector<2x8xf32>
    %264 = vector.shape_cast %263 : vector<2x8xf32> to vector<2x8x1xf32>
    %cst_83 = arith.constant 0.000000e+00 : f32
    %265 = vector.broadcast %cst_83 : f32 to vector<2x8x1xf32>
    %cst_84 = arith.constant dense<0xFF800000> : vector<2x8xf32>
    %266 = vector.multi_reduction <maximumf>, %262, %cst_84 [2] : vector<2x8x56xf32> to vector<2x8xf32>
    %267 = vector.shape_cast %266 : vector<2x8xf32> to vector<2x8x1xf32>
    %268 = arith.addf %265, %267 : vector<2x8x1xf32>
    %269 = vector.broadcast %267 : vector<2x8x1xf32> to vector<2x8x56xf32>
    %270 = arith.cmpf oeq, %262, %269 : vector<2x8x56xf32>
    %cst_85 = arith.constant -1.000000e+00 : f32
    %271 = vector.broadcast %cst_85 : f32 to vector<2x8x56xf32>
    %272 = arith.select %270, %271, %262 : vector<2x8x56xi1>, vector<2x8x56xf32>
    %cst_86 = arith.constant dense<0xFF800000> : vector<2x8xf32>
    %273 = vector.multi_reduction <maximumf>, %272, %cst_86 [2] : vector<2x8x56xf32> to vector<2x8xf32>
    %274 = vector.shape_cast %273 : vector<2x8xf32> to vector<2x8x1xf32>
    %275 = arith.addf %268, %274 : vector<2x8x1xf32>
    %276 = vector.broadcast %274 : vector<2x8x1xf32> to vector<2x8x56xf32>
    %277 = arith.cmpf oeq, %272, %276 : vector<2x8x56xf32>
    %cst_87 = arith.constant -1.000000e+00 : f32
    %278 = vector.broadcast %cst_87 : f32 to vector<2x8x56xf32>
    %279 = arith.select %277, %278, %272 : vector<2x8x56xi1>, vector<2x8x56xf32>
    %cst_88 = arith.constant dense<0xFF800000> : vector<2x8xf32>
    %280 = vector.multi_reduction <maximumf>, %279, %cst_88 [2] : vector<2x8x56xf32> to vector<2x8xf32>
    %281 = vector.shape_cast %280 : vector<2x8xf32> to vector<2x8x1xf32>
    %282 = arith.addf %275, %281 : vector<2x8x1xf32>
    %283 = vector.broadcast %281 : vector<2x8x1xf32> to vector<2x8x56xf32>
    %284 = arith.cmpf oeq, %279, %283 : vector<2x8x56xf32>
    %cst_89 = arith.constant -1.000000e+00 : f32
    %285 = vector.broadcast %cst_89 : f32 to vector<2x8x56xf32>
    %286 = arith.select %284, %285, %279 : vector<2x8x56xi1>, vector<2x8x56xf32>
    %cst_90 = arith.constant dense<0xFF800000> : vector<2x8xf32>
    %287 = vector.multi_reduction <maximumf>, %286, %cst_90 [2] : vector<2x8x56xf32> to vector<2x8xf32>
    %288 = vector.shape_cast %287 : vector<2x8xf32> to vector<2x8x1xf32>
    %289 = arith.addf %282, %288 : vector<2x8x1xf32>
    %290 = vector.broadcast %288 : vector<2x8x1xf32> to vector<2x8x56xf32>
    %291 = arith.cmpf oeq, %286, %290 : vector<2x8x56xf32>
    %cst_91 = arith.constant -1.000000e+00 : f32
    %292 = vector.broadcast %cst_91 : f32 to vector<2x8x56xf32>
    %293 = arith.select %291, %292, %286 : vector<2x8x56xi1>, vector<2x8x56xf32>
    %cst_92 = arith.constant dense<0xFF800000> : vector<2x8xf32>
    %294 = vector.multi_reduction <maximumf>, %293, %cst_92 [2] : vector<2x8x56xf32> to vector<2x8xf32>
    %295 = vector.shape_cast %294 : vector<2x8xf32> to vector<2x8x1xf32>
    %296 = arith.addf %289, %295 : vector<2x8x1xf32>
    %cst_93 = arith.constant 1.000000e-01 : f32
    %297 = vector.broadcast %cst_93 : f32 to vector<2x8x1xf32>
    %298 = arith.mulf %297, %264 : vector<2x8x1xf32>
    %299 = arith.cmpf ogt, %296, %298 : vector<2x8x1xf32>
    %300 = vector.broadcast %299 : vector<2x8x1xi1> to vector<2x8x56xi1>
    %301 = arith.ori %32, %300 : vector<2x8x56xi1>
    %cst_94 = arith.constant -1.000000e+30 : f32
    %302 = vector.broadcast %cst_94 : f32 to vector<2x8x56xf32>
    %303 = arith.select %301, %302, %255 : vector<2x8x56xi1>, vector<2x8x56xf32>
    %cst_95 = arith.constant dense<0xFF800000> : vector<2x8xf32>
    %304 = vector.multi_reduction <maximumf>, %303, %cst_95 [2] : vector<2x8x56xf32> to vector<2x8xf32>
    %305 = vector.shape_cast %304 : vector<2x8xf32> to vector<2x8x1xf32>
    %306 = arith.maximumf %259, %305 : vector<2x8x1xf32>
    %307 = vector.broadcast %306 : vector<2x8x1xf32> to vector<2x8x56xf32>
    %308 = arith.subf %303, %307 : vector<2x8x56xf32>
    %309 = math.exp %308 : vector<2x8x56xf32>
    %310 = arith.subf %259, %306 : vector<2x8x1xf32>
    %311 = math.exp %310 : vector<2x8x1xf32>
    %312 = vector.broadcast %311 : vector<2x8x1xf32> to vector<2x8x56xf32>
    %313 = arith.mulf %262, %312 : vector<2x8x56xf32>
    %314 = arith.addf %309, %313 : vector<2x8x56xf32>
    %cst_96 = arith.constant dense<0.000000e+00> : vector<2x8xf32>
    %315 = vector.multi_reduction <add>, %309, %cst_96 [2] : vector<2x8x56xf32> to vector<2x8xf32>
    %316 = vector.shape_cast %315 : vector<2x8xf32> to vector<2x8x1xf32>
    %317 = arith.mulf %264, %311 : vector<2x8x1xf32>
    %318 = arith.addf %316, %317 : vector<2x8x1xf32>
    %319 = tpu.reciprocal %318 {approx = true} : vector<2x8x1xf32> -> vector<2x8x1xf32>
    %320 = vector.broadcast %319 : vector<2x8x1xf32> to vector<2x8x56xf32>
    %321 = arith.mulf %314, %320 : vector<2x8x56xf32>
    %322 = arith.truncf %321 : vector<2x8x56xf32> to vector<2x8x56xbf16>
    %cst_97 = arith.constant dense<0.000000e+00> : vector<2x8x8xf32>
    %323 = tpu.matmul %322, %254, %cst_97 {dimension_numbers = #tpu.dot_dimension_numbers<[2], [1], [1], [2], [0, 0, 0, 1, 1, 2], [0], [0]>} : vector<2x8x56xbf16>, vector<2x56x8xbf16>, vector<2x8x8xf32> -> vector<2x8x8xf32>
    %324 = vector.shape_cast %323 : vector<2x8x8xf32> to vector<16x8xf32>
    %325 = tpu.concatenate %105, %178, %251, %324 in 1 : vector<16x8xf32>, vector<16x8xf32>, vector<16x8xf32>, vector<16x8xf32> -> vector<16x32xf32>
    %326 = arith.truncf %325 : vector<16x32xf32> to vector<16x32xbf16>
    %c0_98 = arith.constant 0 : index
    %c0_99 = arith.constant 0 : index
    %327 = vector.load %arg10[%c0_98, %c0_99] : memref<32x32xbf16, #tpu.memory_space<vmem>>, vector<32x32xbf16>
    %cst_100 = arith.constant dense<0.000000e+00> : vector<16x32xf32>
    %328 = tpu.matmul %326, %327, %cst_100 {dimension_numbers = #tpu.dot_dimension_numbers<[1], [0], [0], [1], [0, 0, 1, 1], [], []>} : vector<16x32xbf16>, vector<32x32xbf16>, vector<16x32xf32> -> vector<16x32xf32>
    %c0_101 = arith.constant 0 : index
    %c0_102 = arith.constant 0 : index
    %329 = vector.load %arg11[%c0_101, %c0_102] : memref<1x32xf32, #tpu.memory_space<vmem>>, vector<1x32xf32>
    %330 = vector.broadcast %329 : vector<1x32xf32> to vector<16x32xf32>
    %331 = arith.addf %328, %330 : vector<16x32xf32>
    %332 = vector.shape_cast %331 : vector<16x32xf32> to vector<2x8x32xf32>
    %c0_103 = arith.constant 0 : index
    %c0_104 = arith.constant 0 : index
    %c0_105 = arith.constant 0 : index
    %333 = vector.load %arg12[%c0_103, %c0_104, %c0_105] : memref<2x8x32xf32, #tpu.memory_space<vmem>>, vector<2x8x32xf32>
    tpu.vector_store %arg12[%c0_103, %c0_104, %c0_105], %332 {strides = array<i32>} : memref<2x8x32xf32, #tpu.memory_space<vmem>>, vector<2x8x32xf32>,
    return
  }
  func.func @transform_0(%arg0: i32) -> (i32, i32, i32) {
    %c0_i32 = arith.constant 0 : i32
    %c0_i32_0 = arith.constant 0 : i32
    %c0_i32_1 = arith.constant 0 : i32
    return %arg0, %c0_i32, %c0_i32_0 : i32, i32, i32
  }
  func.func @transform_1(%arg0: i32) -> (i32, i32, i32) {
    %c0_i32 = arith.constant 0 : i32
    %c0_i32_0 = arith.constant 0 : i32
    %c0_i32_1 = arith.constant 0 : i32
    return %arg0, %c0_i32, %c0_i32_0 : i32, i32, i32
  }
  func.func @transform_2(%arg0: i32) -> (i32, i32, i32) {
    %c0_i32 = arith.constant 0 : i32
    %c0_i32_0 = arith.constant 0 : i32
    %c0_i32_1 = arith.constant 0 : i32
    return %arg0, %c0_i32, %c0_i32_0 : i32, i32, i32
  }
  func.func @transform_3(%arg0: i32) -> (i32, i32) {
    %c0_i32 = arith.constant 0 : i32
    %c0_i32_0 = arith.constant 0 : i32
    %c0_i32_1 = arith.constant 0 : i32
    return %c0_i32, %c0_i32_0 : i32, i32
  }
  func.func @transform_4(%arg0: i32) -> (i32, i32) {
    %c0_i32 = arith.constant 0 : i32
    %c0_i32_0 = arith.constant 0 : i32
    %c0_i32_1 = arith.constant 0 : i32
    return %c0_i32, %c0_i32_0 : i32, i32
  }
  func.func @transform_5(%arg0: i32) -> (i32, i32) {
    %c0_i32 = arith.constant 0 : i32
    %c0_i32_0 = arith.constant 0 : i32
    %c0_i32_1 = arith.constant 0 : i32
    return %c0_i32, %c0_i32_0 : i32, i32
  }
  func.func @transform_6(%arg0: i32) -> (i32, i32) {
    %c0_i32 = arith.constant 0 : i32
    %c0_i32_0 = arith.constant 0 : i32
    %c0_i32_1 = arith.constant 0 : i32
    return %c0_i32, %c0_i32_0 : i32, i32
  }
  func.func @transform_7(%arg0: i32) -> (i32, i32) {
    %c0_i32 = arith.constant 0 : i32
    %c0_i32_0 = arith.constant 0 : i32
    %c0_i32_1 = arith.constant 0 : i32
    return %c0_i32, %c0_i32_0 : i32, i32
  }
  func.func @transform_8(%arg0: i32) -> (i32, i32) {
    %c0_i32 = arith.constant 0 : i32
    %c0_i32_0 = arith.constant 0 : i32
    %c0_i32_1 = arith.constant 0 : i32
    return %c0_i32, %c0_i32_0 : i32, i32
  }
  func.func @transform_9(%arg0: i32) -> (i32, i32) {
    %c0_i32 = arith.constant 0 : i32
    %c0_i32_0 = arith.constant 0 : i32
    %c0_i32_1 = arith.constant 0 : i32
    return %c0_i32, %c0_i32_0 : i32, i32
  }
  func.func @transform_10(%arg0: i32) -> (i32, i32) {
    %c0_i32 = arith.constant 0 : i32
    %c0_i32_0 = arith.constant 0 : i32
    %c0_i32_1 = arith.constant 0 : i32
    return %c0_i32, %c0_i32_0 : i32, i32
  }
  func.func @transform_11(%arg0: i32) -> (i32, i32, i32) {
    %c0_i32 = arith.constant 0 : i32
    %c0_i32_0 = arith.constant 0 : i32
    %c0_i32_1 = arith.constant 0 : i32
    return %arg0, %c0_i32, %c0_i32_0 : i32, i32, i32
  }
}

</mosaic_0001>

<llo_original>
// kernel: tpu_custom_call.1
$region0: #{tpu_custom_call.1}
  #allocation0 [shape = 'u32[]', space=smem, size = 0x4, offset = 0x4, fixed_abs, tag = 'smem constant byte address 0x4 - core index']
  #allocation1 [shape = 'u32[144,128]{1,0:T(1,128)}', space=vmem, size = 0x12000, scoped, tag = 'internal scratch']
  %s0 = inlined_call_operand.vmem [shape: f32[4,8,32], index: 0, kind: input, shape index: {}]
  %s1 = inlined_call_operand.vmem [shape: f32[4,56,32], index: 1, kind: input, shape index: {}]
  %s2 = inlined_call_operand.vmem [shape: f32[4,56,32], index: 2, kind: input, shape index: {}]
  %s3 = inlined_call_operand.vmem [shape: bf16[32,32], index: 3, kind: input, shape index: {}]
  %s4 = inlined_call_operand.vmem [shape: f32[1,32], index: 4, kind: input, shape index: {}]
  %s5 = inlined_call_operand.vmem [shape: bf16[32,32], index: 5, kind: input, shape index: {}]
  %s6 = inlined_call_operand.vmem [shape: f32[1,32], index: 6, kind: input, shape index: {}]
  %s7 = inlined_call_operand.vmem [shape: bf16[32,32], index: 7, kind: input, shape index: {}]
  %s8 = inlined_call_operand.vmem [shape: f32[1,32], index: 8, kind: input, shape index: {}]
  %s9 = inlined_call_operand.vmem [shape: bf16[32,32], index: 9, kind: input, shape index: {}]
  %s10 = inlined_call_operand.vmem [shape: f32[1,32], index: 10, kind: input, shape index: {}]
  %s11 = inlined_call_operand.hbm [shape: f32[4,8,32], index: 11, kind: output, shape index: {}]
  %s12 = sld [smem:[#allocation0]]
  $region77: #{tpu_custom_call.1} parent=0
    _
  %s14 = ssub.s32 1, %s12
  %s15 = scalar_select 0, %s14, %s12
  $region1: #{tpu_custom_call.1} parent=0
    #allocation2 [shape = 'u8[16384]{0}', space=vmem, size = 0x4000, scoped, tag = 'output window, operand 0']
    #allocation3 [shape = 's32[2]{0}', space=sflag, size = 0x8, scoped, tag = 'scoped memory for tpu_custom_call.1']
    %16 = vsyncpa [#allocation3], 0
    %s17 = scalar_lea.sflag [#allocation3], 1
    %18 = vsyncpa %s17, 0
    loop: start=0, step=1, limit=4
    $region2: #{tpu_custom_call.1} parent=1 // loop_pre_header
      _
    $region3: #{tpu_custom_call.1} parent=1 // loop_header
      %s20 = sphi 0, %s24
      %p21 = scmp.ge.s32.totalorder %s20, 4
      %s30 = sphi 0, %s32
      %s33 = sphi 0, %s30
      %s34 = sphi 0, %s33
      %s50 = sphi 0, %s34
      %s56 = sphi 0, %s58
      %s59 = sphi 0, %s56
      %s60 = sphi 0, %s59
      %s76 = sphi 0, %s60
      %s82 = sphi 0, %s84
      %s85 = sphi 0, %s82
      %s86 = sphi 0, %s85
      %s102 = sphi 0, %s86
      %s106 = sphi 0, %s106
      %s108 = sphi 0, %s106
      %s109 = sphi 0, %s108
      %s123 = sphi 0, %s109
      %s127 = sphi 0, %s127
      %s129 = sphi 0, %s127
      %s130 = sphi 0, %s129
      %s144 = sphi 0, %s130
      %s148 = sphi 0, %s148
      %s150 = sphi 0, %s148
      %s151 = sphi 0, %s150
      %s165 = sphi 0, %s151
      %s169 = sphi 0, %s169
      %s171 = sphi 0, %s169
      %s172 = sphi 0, %s171
      %s186 = sphi 0, %s172
      %s190 = sphi 0, %s190
      %s192 = sphi 0, %s190
      %s193 = sphi 0, %s192
      %s207 = sphi 0, %s193
      %s211 = sphi 0, %s211
      %s213 = sphi 0, %s211
      %s214 = sphi 0, %s213
      %s228 = sphi 0, %s214
      %s232 = sphi 0, %s232
      %s234 = sphi 0, %s232
      %s235 = sphi 0, %s234
      %s249 = sphi 0, %s235
      %s253 = sphi 0, %s253
      %s255 = sphi 0, %s253
      %s256 = sphi 0, %s255
      %s270 = sphi 0, %s256
      %s276 = sphi 0, %s278
      %s279 = sphi 0, %s276
      %s280 = sphi 0, %s279
      %s296 = sphi 0, %s280
    $region4: #{tpu_custom_call.1} parent=1 // loop_header_branch
      %23 = sbr.rel (%p21) target = $region8
    $region5: #{tpu_custom_call.1} parent=1 // loop_body
      %s25 = ssub.s32 %s20, 1
      %s26 = ssub.s32 %s20, 2
      %s27 = sadd.s32 %s20, 1
      %s28 = ssub.s32 %s20, %s27
      %p29 = scmp.eq.s32.totalorder %s28, 0
      %s31 = sadd.s32 %s30, 1
      %s32 = scalar_select %p29, %s30, %s31
      %p35 = pneg %p29
      %p36 = scmp.eq.s32.totalorder %s20, 1
      %p37 = por %p35, %p36
      %p38 = scmp.ne.s32.totalorder %s30, %s33
      %p39 = scmp.eq.s32.totalorder %s20, 0
      %p40 = por %p38, %p39
      %p41 = scmp.ne.s32.totalorder %s30, %s33
      %p42 = scmp.eq.s32.totalorder %s25, 1
      %p43 = por %p41, %p42
      %p44 = scmp.ne.s32.totalorder %s33, %s34
      %p45 = scmp.eq.s32.totalorder %s25, 0
      %p46 = por %p44, %p45
      %p47 = scmp.ne.s32.totalorder %s33, %s34
      %p48 = scmp.eq.s32.totalorder %s26, 1
      %p49 = por %p47, %p48
      %p51 = scmp.ne.s32.totalorder %s34, %s50
      %p52 = scmp.eq.s32.totalorder %s26, 0
      %p53 = por %p51, %p52
      %s54 = ssub.s32 %s20, %s27
      %p55 = scmp.eq.s32.totalorder %s54, 0
      %s57 = sadd.s32 %s56, 1
      %s58 = scalar_select %p55, %s56, %s57
      %p61 = pneg %p55
      %p62 = scmp.eq.s32.totalorder %s20, 1
      %p63 = por %p61, %p62
      %p64 = scmp.ne.s32.totalorder %s56, %s59
      %p65 = scmp.eq.s32.totalorder %s20, 0
      %p66 = por %p64, %p65
      %p67 = scmp.ne.s32.totalorder %s56, %s59
      %p68 = scmp.eq.s32.totalorder %s25, 1
      %p69 = por %p67, %p68
      %p70 = scmp.ne.s32.totalorder %s59, %s60
      %p71 = scmp.eq.s32.totalorder %s25, 0
      %p72 = por %p70, %p71
      %p73 = scmp.ne.s32.totalorder %s59, %s60
      %p74 = scmp.eq.s32.totalorder %s26, 1
      %p75 = por %p73, %p74
      %p77 = scmp.ne.s32.totalorder %s60, %s76
      %p78 = scmp.eq.s32.totalorder %s26, 0
      %p79 = por %p77, %p78
      %s80 = ssub.s32 %s20, %s27
      %p81 = scmp.eq.s32.totalorder %s80, 0
      %s83 = sadd.s32 %s82, 1
      %s84 = scalar_select %p81, %s82, %s83
      %p87 = pneg %p81
      %p88 = scmp.eq.s32.totalorder %s20, 1
      %p89 = por %p87, %p88
      %p90 = scmp.ne.s32.totalorder %s82, %s85
      %p91 = scmp.eq.s32.totalorder %s20, 0
      %p92 = por %p90, %p91
      %p93 = scmp.ne.s32.totalorder %s82, %s85
      %p94 = scmp.eq.s32.totalorder %s25, 1
      %p95 = por %p93, %p94
      %p96 = scmp.ne.s32.totalorder %s85, %s86
      %p97 = scmp.eq.s32.totalorder %s25, 0
      %p98 = por %p96, %p97
      %p99 = scmp.ne.s32.totalorder %s85, %s86
      %p100 = scmp.eq.s32.totalorder %s26, 1
      %p101 = por %p99, %p100
      %p103 = scmp.ne.s32.totalorder %s86, %s102
      %p104 = scmp.eq.s32.totalorder %s26, 0
      %p105 = por %p103, %p104
      %s107 = sadd.s32 %s106, 1
      %p110 = scmp.eq.s32.totalorder %s20, 1
      %p111 = scmp.ne.s32.totalorder %s106, %s108
      %p112 = scmp.eq.s32.totalorder %s20, 0
      %p113 = por %p111, %p112
      %p114 = scmp.ne.s32.totalorder %s106, %s108
      %p115 = scmp.eq.s32.totalorder %s25, 1
      %p116 = por %p114, %p115
      %p117 = scmp.ne.s32.totalorder %s108, %s109
      %p118 = scmp.eq.s32.totalorder %s25, 0
      %p119 = por %p117, %p118
      %p120 = scmp.ne.s32.totalorder %s108, %s109
      %p121 = scmp.eq.s32.totalorder %s26, 1
      %p122 = por %p120, %p121
      %p124 = scmp.ne.s32.totalorder %s109, %s123
      %p125 = scmp.eq.s32.totalorder %s26, 0
      %p126 = por %p124, %p125
      %s128 = sadd.s32 %s127, 1
      %p131 = scmp.eq.s32.totalorder %s20, 1
      %p132 = scmp.ne.s32.totalorder %s127, %s129
      %p133 = scmp.eq.s32.totalorder %s20, 0
      %p134 = por %p132, %p133
      %p135 = scmp.ne.s32.totalorder %s127, %s129
      %p136 = scmp.eq.s32.totalorder %s25, 1
      %p137 = por %p135, %p136
      %p138 = scmp.ne.s32.totalorder %s129, %s130
      %p139 = scmp.eq.s32.totalorder %s25, 0
      %p140 = por %p138, %p139
      %p141 = scmp.ne.s32.totalorder %s129, %s130
      %p142 = scmp.eq.s32.totalorder %s26, 1
      %p143 = por %p141, %p142
      %p145 = scmp.ne.s32.totalorder %s130, %s144
      %p146 = scmp.eq.s32.totalorder %s26, 0
      %p147 = por %p145, %p146
      %s149 = sadd.s32 %s148, 1
      %p152 = scmp.eq.s32.totalorder %s20, 1
      %p153 = scmp.ne.s32.totalorder %s148, %s150
      %p154 = scmp.eq.s32.totalorder %s20, 0
      %p155 = por %p153, %p154
      %p156 = scmp.ne.s32.totalorder %s148, %s150
      %p157 = scmp.eq.s32.totalorder %s25, 1
      %p158 = por %p156, %p157
      %p159 = scmp.ne.s32.totalorder %s150, %s151
      %p160 = scmp.eq.s32.totalorder %s25, 0
      %p161 = por %p159, %p160
      %p162 = scmp.ne.s32.totalorder %s150, %s151
      %p163 = scmp.eq.s32.totalorder %s26, 1
      %p164 = por %p162, %p163
      %p166 = scmp.ne.s32.totalorder %s151, %s165
      %p167 = scmp.eq.s32.totalorder %s26, 0
      %p168 = por %p166, %p167
      %s170 = sadd.s32 %s169, 1
      %p173 = scmp.eq.s32.totalorder %s20, 1
      %p174 = scmp.ne.s32.totalorder %s169, %s171
      %p175 = scmp.eq.s32.totalorder %s20, 0
      %p176 = por %p174, %p175
      %p177 = scmp.ne.s32.totalorder %s169, %s171
      %p178 = scmp.eq.s32.totalorder %s25, 1
      %p179 = por %p177, %p178
      %p180 = scmp.ne.s32.totalorder %s171, %s172
      %p181 = scmp.eq.s32.totalorder %s25, 0
      %p182 = por %p180, %p181
      %p183 = scmp.ne.s32.totalorder %s171, %s172
      %p184 = scmp.eq.s32.totalorder %s26, 1
      %p185 = por %p183, %p184
      %p187 = scmp.ne.s32.totalorder %s172, %s186
      %p188 = scmp.eq.s32.totalorder %s26, 0
      %p189 = por %p187, %p188
      %s191 = sadd.s32 %s190, 1
      %p194 = scmp.eq.s32.totalorder %s20, 1
      %p195 = scmp.ne.s32.totalorder %s190, %s192
      %p196 = scmp.eq.s32.totalorder %s20, 0
      %p197 = por %p195, %p196
      %p198 = scmp.ne.s32.totalorder %s190, %s192
      %p199 = scmp.eq.s32.totalorder %s25, 1
      %p200 = por %p198, %p199
      %p201 = scmp.ne.s32.totalorder %s192, %s193
      %p202 = scmp.eq.s32.totalorder %s25, 0
      %p203 = por %p201, %p202
      %p204 = scmp.ne.s32.totalorder %s192, %s193
      %p205 = scmp.eq.s32.totalorder %s26, 1
      %p206 = por %p204, %p205
      %p208 = scmp.ne.s32.totalorder %s193, %s207
      %p209 = scmp.eq.s32.totalorder %s26, 0
      %p210 = por %p208, %p209
      %s212 = sadd.s32 %s211, 1
      %p215 = scmp.eq.s32.totalorder %s20, 1
      %p216 = scmp.ne.s32.totalorder %s211, %s213
      %p217 = scmp.eq.s32.totalorder %s20, 0
      %p218 = por %p216, %p217
      %p219 = scmp.ne.s32.totalorder %s211, %s213
      %p220 = scmp.eq.s32.totalorder %s25, 1
      %p221 = por %p219, %p220
      %p222 = scmp.ne.s32.totalorder %s213, %s214
      %p223 = scmp.eq.s32.totalorder %s25, 0
      %p224 = por %p222, %p223
      %p225 = scmp.ne.s32.totalorder %s213, %s214
      %p226 = scmp.eq.s32.totalorder %s26, 1
      %p227 = por %p225, %p226
      %p229 = scmp.ne.s32.totalorder %s214, %s228
      %p230 = scmp.eq.s32.totalorder %s26, 0
      %p231 = por %p229, %p230
      %s233 = sadd.s32 %s232, 1
      %p236 = scmp.eq.s32.totalorder %s20, 1
      %p237 = scmp.ne.s32.totalorder %s232, %s234
      %p238 = scmp.eq.s32.totalorder %s20, 0
      %p239 = por %p237, %p238
      %p240 = scmp.ne.s32.totalorder %s232, %s234
      %p241 = scmp.eq.s32.totalorder %s25, 1
      %p242 = por %p240, %p241
      %p243 = scmp.ne.s32.totalorder %s234, %s235
      %p244 = scmp.eq.s32.totalorder %s25, 0
      %p245 = por %p243, %p244
      %p246 = scmp.ne.s32.totalorder %s234, %s235
      %p247 = scmp.eq.s32.totalorder %s26, 1
      %p248 = por %p246, %p247
      %p250 = scmp.ne.s32.totalorder %s235, %s249
      %p251 = scmp.eq.s32.totalorder %s26, 0
      %p252 = por %p250, %p251
      %s254 = sadd.s32 %s253, 1
      %p257 = scmp.eq.s32.totalorder %s20, 1
      %p258 = scmp.ne.s32.totalorder %s253, %s255
      %p259 = scmp.eq.s32.totalorder %s20, 0
      %p260 = por %p258, %p259
      %p261 = scmp.ne.s32.totalorder %s253, %s255
      %p262 = scmp.eq.s32.totalorder %s25, 1
      %p263 = por %p261, %p262
      %p264 = scmp.ne.s32.totalorder %s255, %s256
      %p265 = scmp.eq.s32.totalorder %s25, 0
      %p266 = por %p264, %p265
      %p267 = scmp.ne.s32.totalorder %s255, %s256
      %p268 = scmp.eq.s32.totalorder %s26, 1
      %p269 = por %p267, %p268
      %p271 = scmp.ne.s32.totalorder %s256, %s270
      %p272 = scmp.eq.s32.totalorder %s26, 0
      %p273 = por %p271, %p272
      %s274 = ssub.s32 %s20, %s27
      %p275 = scmp.eq.s32.totalorder %s274, 0
      %s277 = sadd.s32 %s276, 1
      %s278 = scalar_select %p275, %s276, %s277
      %p281 = pneg %p275
      %p282 = scmp.eq.s32.totalorder %s20, 1
      %p283 = por %p281, %p282
      %p284 = scmp.ne.s32.totalorder %s276, %s279
      %p285 = scmp.eq.s32.totalorder %s20, 0
      %p286 = por %p284, %p285
      %p287 = scmp.ne.s32.totalorder %s276, %s279
      %p288 = scmp.eq.s32.totalorder %s25, 1
      %p289 = por %p287, %p288
      %p290 = scmp.ne.s32.totalorder %s279, %s280
      %p291 = scmp.eq.s32.totalorder %s25, 0
      %p292 = por %p290, %p291
      %p293 = scmp.ne.s32.totalorder %s279, %s280
      %p294 = scmp.eq.s32.totalorder %s26, 1
      %p295 = por %p293, %p294
      %p297 = scmp.ne.s32.totalorder %s280, %s296
      %p298 = scmp.eq.s32.totalorder %s26, 0
      %p299 = por %p297, %p298
      %p300 = scmp.le.s32.totalorder 1, %s20
      %p301 = scmp.lt.s32.totalorder %s20, 3
      %p302 = pnand %p300, %p301
      %p303 = pneg %p302
      // Predicated region
      $region9: #{tpu_custom_call.1} parent=5 // pred_check
        _
      $region10: #{tpu_custom_call.1} parent=5 // pred_check_branch
        %305 = sbr.rel (%p302) target = $region12
      $region11: #{tpu_custom_call.1} parent=5 // pred_region
        %s306 = ssub.s32 %s20, 1
        // Predicated region
        $region13: #{tpu_custom_call.1} parent=11 // pred_check
          %p307 = pneg %p119
        $region14: #{tpu_custom_call.1} parent=11 // pred_check_branch
          %309 = sbr.rel (%p307) target = $region16
        $region15: #{tpu_custom_call.1} parent=11 // pred_region
          _
        $region16: #{tpu_custom_call.1} parent=11 // pred_fallthru
          _
        // Predicated region
        $region17: #{tpu_custom_call.1} parent=11 // pred_check
          %p310 = pneg %p140
        $region18: #{tpu_custom_call.1} parent=11 // pred_check_branch
          %312 = sbr.rel (%p310) target = $region20
        $region19: #{tpu_custom_call.1} parent=11 // pred_region
          _
        $region20: #{tpu_custom_call.1} parent=11 // pred_fallthru
          _
        // Predicated region
        $region21: #{tpu_custom_call.1} parent=11 // pred_check
          %p313 = pneg %p161
        $region22: #{tpu_custom_call.1} parent=11 // pred_check_branch
          %315 = sbr.rel (%p313) target = $region24
        $region23: #{tpu_custom_call.1} parent=11 // pred_region
          _
        $region24: #{tpu_custom_call.1} parent=11 // pred_fallthru
          _
        // Predicated region
        $region25: #{tpu_custom_call.1} parent=11 // pred_check
          %p316 = pneg %p182
        $region26: #{tpu_custom_call.1} parent=11 // pred_check_branch
          %318 = sbr.rel (%p316) target = $region28
        $region27: #{tpu_custom_call.1} parent=11 // pred_region
          _
        $region28: #{tpu_custom_call.1} parent=11 // pred_fallthru
          _
        // Predicated region
        $region29: #{tpu_custom_call.1} parent=11 // pred_check
          %p319 = pneg %p203
        $region30: #{tpu_custom_call.1} parent=11 // pred_check_branch
          %321 = sbr.rel (%p319) target = $region32
        $region31: #{tpu_custom_call.1} parent=11 // pred_region
          _
        $region32: #{tpu_custom_call.1} parent=11 // pred_fallthru
          _
        // Predicated region
        $region33: #{tpu_custom_call.1} parent=11 // pred_check
          %p322 = pneg %p224
        $region34: #{tpu_custom_call.1} parent=11 // pred_check_branch
          %324 = sbr.rel (%p322) target = $region36
        $region35: #{tpu_custom_call.1} parent=11 // pred_region
          _
        $region36: #{tpu_custom_call.1} parent=11 // pred_fallthru
          _
        // Predicated region
        $region37: #{tpu_custom_call.1} parent=11 // pred_check
          %p325 = pneg %p245
        $region38: #{tpu_custom_call.1} parent=11 // pred_check_branch
          %327 = sbr.rel (%p325) target = $region40
        $region39: #{tpu_custom_call.1} parent=11 // pred_region
          _
        $region40: #{tpu_custom_call.1} parent=11 // pred_fallthru
          _
        // Predicated region
        $region41: #{tpu_custom_call.1} parent=11 // pred_check
          %p328 = pneg %p266
        $region42: #{tpu_custom_call.1} parent=11 // pred_check_branch
          %330 = sbr.rel (%p328) target = $region44
        $region43: #{tpu_custom_call.1} parent=11 // pred_region
          _
        $region44: #{tpu_custom_call.1} parent=11 // pred_fallthru
          _
      $region12: #{tpu_custom_call.1} parent=5 // pred_fallthru
        _
      %p331 = scmp.lt.s32.totalorder %s20, 2
      // Predicated region
      $region45: #{tpu_custom_call.1} parent=5 // pred_check
        %p332 = pneg %p331
      $region46: #{tpu_custom_call.1} parent=5 // pred_check_branch
        %334 = sbr.rel (%p332) target = $region48
      $region47: #{tpu_custom_call.1} parent=5 // pred_region
        // Predicated region
        $region49: #{tpu_custom_call.1} parent=47 // pred_check
          %p335 = pneg %p40
        $region50: #{tpu_custom_call.1} parent=47 // pred_check_branch
          %337 = sbr.rel (%p335) target = $region52
        $region51: #{tpu_custom_call.1} parent=47 // pred_region
          %s338 = smul.u32 2, %s20
          %p339 = scmp.lt.s32.totalorder %s338, 3
          %s340 = scalar_select %p339, %s338, 3
          %s341 = smul.addr %s340, 8
          %s342 = scalar_lea.vmem %s0, %s341
          %s343 = smul.u32 2, %s20
        $region52: #{tpu_custom_call.1} parent=47 // pred_fallthru
          _
        // Predicated region
        $region53: #{tpu_custom_call.1} parent=47 // pred_check
          %p344 = pneg %p66
        $region54: #{tpu_custom_call.1} parent=47 // pred_check_branch
          %346 = sbr.rel (%p344) target = $region56
        $region55: #{tpu_custom_call.1} parent=47 // pred_region
          %s347 = smul.u32 2, %s20
          %p348 = scmp.lt.s32.totalorder %s347, 3
          %s349 = scalar_select %p348, %s347, 3
          %s350 = smul.addr %s349, 7
          %s351 = smul.addr %s350, 8
          %s352 = scalar_lea.vmem %s1, %s351
          %s353 = smul.u32 2, %s20
        $region56: #{tpu_custom_call.1} parent=47 // pred_fallthru
          _
        // Predicated region
        $region57: #{tpu_custom_call.1} parent=47 // pred_check
          %p354 = pneg %p92
        $region58: #{tpu_custom_call.1} parent=47 // pred_check_branch
          %356 = sbr.rel (%p354) target = $region60
        $region59: #{tpu_custom_call.1} parent=47 // pred_region
          %s357 = smul.u32 2, %s20
          %p358 = scmp.lt.s32.totalorder %s357, 3
          %s359 = scalar_select %p358, %s357, 3
          %s360 = smul.addr %s359, 7
          %s361 = smul.addr %s360, 8
          %s362 = scalar_lea.vmem %s2, %s361
          %s363 = smul.u32 2, %s20
        $region60: #{tpu_custom_call.1} parent=47 // pred_fallthru
          _
      $region48: #{tpu_custom_call.1} parent=5 // pred_fallthru
        _
      %p364 = scmp.le.s32.totalorder 1, %s20
      %p365 = scmp.lt.s32.totalorder %s20, 3
      %p366 = pnand %p364, %p365
      %p367 = pneg %p366
      // Predicated region
      $region61: #{tpu_custom_call.1} parent=5 // pred_check
        _
      $region62: #{tpu_custom_call.1} parent=5 // pred_check_branch
        %369 = sbr.rel (%p366) target = $region64
      $region63: #{tpu_custom_call.1} parent=5 // pred_region
        %s370 = ssub.s32 %s20, 1
        %s371 = smul.u32 2, %s25
        %p372 = scmp.lt.s32.totalorder %s371, 3
        %s373 = scalar_select %p372, %s371, 3
        %s374 = smul.addr %s373, 8
        %s375 = scalar_lea.vmem %s0, %s374
        %p376 = pneg %p46
        %p377 = pneg %p43
        %s378 = smul.u32 2, %s25
        %p379 = scmp.lt.s32.totalorder %s378, 3
        %s380 = scalar_select %p379, %s378, 3
        %s381 = smul.addr %s380, 7
        %s382 = smul.addr %s381, 8
        %s383 = scalar_lea.vmem %s1, %s382
        %p384 = pneg %p72
        %p385 = pneg %p69
        %s386 = smul.u32 2, %s25
        %p387 = scmp.lt.s32.totalorder %s386, 3
        %s388 = scalar_select %p387, %s386, 3
        %s389 = smul.addr %s388, 7
        %s390 = smul.addr %s389, 8
        %s391 = scalar_lea.vmem %s2, %s390
        %p392 = pneg %p98
        %p393 = pneg %p95
        %p394 = pneg %p119
        %p395 = pneg %p116
        %p396 = pneg %p140
        %p397 = pneg %p137
        %p398 = pneg %p161
        %p399 = pneg %p158
        %p400 = pneg %p182
        %p401 = pneg %p179
        %p402 = pneg %p203
        %p403 = pneg %p200
        %p404 = pneg %p224
        %p405 = pneg %p221
        %p406 = pneg %p245
        %p407 = pneg %p242
        %p408 = pneg %p266
        %p409 = pneg %p263
        %p410 = pneg %p292
        %p411 = pneg %p289
        %s412 = sand.u32 %s279, 1
        %s413 = scalar_lea.sflag [#allocation3], %s412
        %s414 = sand.u32 %s279, 1
        %s415 = smul.addr %s414, 16
        %s416 = scalar_lea.vmem [#allocation2], %s415
        %s417 = smul.u32 2, %s25
        %p418 = scmp.lt.s32.totalorder %s417, 3
        %s419 = scalar_select %p418, %s417, 3
        %s420 = smul.addr %s419, 8
        %s421 = scalar_lea.vmem %s0, %s420
        %s422 = smul.u32 2, %s25
        %s423 = smul.u32 2, %s25
        %p424 = scmp.lt.s32.totalorder %s423, 3
        %s425 = scalar_select %p424, %s423, 3
        %s426 = smul.addr %s425, 7
        %s427 = smul.addr %s426, 8
        %s428 = scalar_lea.vmem %s1, %s427
        %s429 = smul.u32 2, %s25
        %s430 = smul.u32 2, %s25
        %p431 = scmp.lt.s32.totalorder %s430, 3
        %s432 = scalar_select %p431, %s430, 3
        %s433 = smul.addr %s432, 7
        %s434 = smul.addr %s433, 8
        %s435 = scalar_lea.vmem %s2, %s434
        %s436 = smul.u32 2, %s25
        %s437 = smul.u32 2, %s25
        %v439 = vld [vmem:[%s421] sm:$0xff]
        %v440 = vld [vmem:[%s421 + $0x8] sm:$0xff]
        %v441 = vpack.c.bf16 %v440, %v439
        %v442 = vld [vmem:[%s428] sm:$0xff]
        %v443 = vld [vmem:[%s428 + $0x8] sm:$0xff]
        %v444 = vld [vmem:[%s428 + $0x10] sm:$0xff]
        %v445 = vld [vmem:[%s428 + $0x18] sm:$0xff]
        %v446 = vld [vmem:[%s428 + $0x20] sm:$0xff]
        %v447 = vld [vmem:[%s428 + $0x28] sm:$0xff]
        %v448 = vld [vmem:[%s428 + $0x30] sm:$0xff]
        %v449 = vld [vmem:[%s428 + $0x38] sm:$0xff]
        %v450 = vld [vmem:[%s428 + $0x40] sm:$0xff]
        %v451 = vld [vmem:[%s428 + $0x48] sm:$0xff]
        %v452 = vld [vmem:[%s428 + $0x50] sm:$0xff]
        %v453 = vld [vmem:[%s428 + $0x58] sm:$0xff]
        %v454 = vld [vmem:[%s428 + $0x60] sm:$0xff]
        %v455 = vld [vmem:[%s428 + $0x68] sm:$0xff]
        %v456 = vpack.c.bf16 %v443, %v442
        %v457 = vpack.c.bf16 %v445, %v444
        %v458 = vpack.c.bf16 %v447, %v446
        %v459 = vpack.c.bf16 %v449, %v448
        %v460 = vpack.c.bf16 %v451, %v450
        %v461 = vpack.c.bf16 %v453, %v452
        %v462 = vpack.c.bf16 %v455, %v454
        %v463 = vld [vmem:[%s435] sm:$0xff]
        %v464 = vld [vmem:[%s435 + $0x8] sm:$0xff]
        %v465 = vld [vmem:[%s435 + $0x10] sm:$0xff]
        %v466 = vld [vmem:[%s435 + $0x18] sm:$0xff]
        %v467 = vld [vmem:[%s435 + $0x20] sm:$0xff]
        %v468 = vld [vmem:[%s435 + $0x28] sm:$0xff]
        %v469 = vld [vmem:[%s435 + $0x30] sm:$0xff]
        %v470 = vld [vmem:[%s435 + $0x38] sm:$0xff]
        %v471 = vld [vmem:[%s435 + $0x40] sm:$0xff]
        %v472 = vld [vmem:[%s435 + $0x48] sm:$0xff]
        %v473 = vld [vmem:[%s435 + $0x50] sm:$0xff]
        %v474 = vld [vmem:[%s435 + $0x58] sm:$0xff]
        %v475 = vld [vmem:[%s435 + $0x60] sm:$0xff]
        %v476 = vld [vmem:[%s435 + $0x68] sm:$0xff]
        %v477 = vpack.c.bf16 %v464, %v463
        %v478 = vpack.c.bf16 %v466, %v465
        %v479 = vpack.c.bf16 %v468, %v467
        %v480 = vpack.c.bf16 %v470, %v469
        %v481 = vpack.c.bf16 %v472, %v471
        %v482 = vpack.c.bf16 %v474, %v473
        %v483 = vpack.c.bf16 %v476, %v475
        %v484 = vld [vmem:[%s3] sm:$0xf]
        %v485 = vld [vmem:[%s3 + $0x4] sm:$0xf]
        %v486 = vld [vmem:[%s3 + $0x8] sm:$0xf]
        %v487 = vld [vmem:[%s3 + $0xc] sm:$0xf]
        %v488 = vld [vmem:[%s4] sm:$0x1]
        %v490 = vlaneseq
        %v491 = vshrl.u32 %v490, 7
        %v492 = vsub.s32 0, %v491
        %v493 = vrot.slane %v488, %v492
        %v499 = vunpack.c.l.b16 %v484
        %v500 = vunpack.c.l.b16 %v485
        %v501 = vunpack.c.l.b16 %v486
        %v502 = vunpack.c.l.b16 %v487
        %v503 = vpack.c.b16 %v500, %v499
        %v504 = vpack.c.b16 %v502, %v501
        %vm507 = vcmask 261120
        %v509 = vsel %vm507, %v441, 0
        %511 = vmatprep.subr.bf16.mxu0 0
        %512 = vmatpush1.bf16.msra.mxu0 %v503
        %513 = vmatprep.subr.bf16.mxu0 0
        %514 = vmatpush1.bf16.msra.mxu0 %v504
        %515 = vmatprep.subr.bf16.mxu0 0
        %516 = vmatpush1.bf16.msra.mxu0 0
        %517 = vmatprep.subr.bf16.mxu0 0
        %518 = vmatpush1.bf16.msra.mxu0 0
        %519 = vmatprep.subr.bf16.mxu0 0
        %520 = vmatpush1.bf16.msra.mxu0 0
        %521 = vmatprep.subr.bf16.mxu0 0
        %522 = vmatpush1.bf16.msra.mxu0 0
        %523 = vmatprep.subr.bf16.mxu0 0
        %524 = vmatpush1.bf16.msra.mxu0 0
        %525 = vmatprep.subr.bf16.mxu0 0
        %526 = vmatpush1.bf16.msra.mxu0 0
        %527 = vmatprep.subr.bf16.mxu0 0
        %528 = vmatpush1.bf16.msra.mxu0 0
        %529 = vmatprep.subr.bf16.mxu0 0
        %530 = vmatpush1.bf16.msra.mxu0 0
        %531 = vmatprep.subr.bf16.mxu0 0
        %532 = vmatpush1.bf16.msra.mxu0 0
        %533 = vmatprep.subr.bf16.mxu0 0
        %534 = vmatpush1.bf16.msra.mxu0 0
        %535 = vmatprep.subr.bf16.mxu0 0
        %536 = vmatpush1.bf16.msra.mxu0 0
        %537 = vmatprep.subr.bf16.mxu0 0
        %538 = vmatpush1.bf16.msra.mxu0 0
        %539 = vmatprep.subr.bf16.mxu0 0
        %540 = vmatpush1.bf16.msra.mxu0 0
        %541 = vmatprep.subr.bf16.mxu0 0
        %542 = vmatpush1.bf16.msra.mxu0 0
        %543 = vmatprep.mubr.bf16.mxu0 0
        %544 = vmatmul.mubr.bf16.gmra.mrb[0].mxu0 %v509
        %v545 = vpop.f32.mrb[0].mxu0
        %v546 = vadd.f32 %v493, %v545
        %v547 = vpop.f32.mrb[0].mxu0
        %v548 = vpop.f32.mrb[0].mxu0
        %v549 = vadd.f32 %v493, %v548
        %v550 = vpop.f32.mrb[0].mxu0
        %551 = vdwg.mxu0
        %v552 = vpack.c.bf16 %v546, %v546
        %v553 = vpack.c.bf16 %v549, %v549
        %v554 = vld [vmem:[%s5] sm:$0xf]
        %v555 = vld [vmem:[%s5 + $0x4] sm:$0xf]
        %v556 = vld [vmem:[%s5 + $0x8] sm:$0xf]
        %v557 = vld [vmem:[%s5 + $0xc] sm:$0xf]
        %v558 = vld [vmem:[%s6] sm:$0x1]
        %v560 = vlaneseq
        %v561 = vshrl.u32 %v560, 7
        %v562 = vsub.s32 0, %v561
        %v563 = vrot.slane %v558, %v562
        %v569 = vunpack.c.l.b16 %v554
        %v570 = vunpack.c.l.b16 %v555
        %v571 = vunpack.c.l.b16 %v556
        %v572 = vunpack.c.l.b16 %v557
        %v573 = vpack.c.b16 %v570, %v569
        %v574 = vpack.c.b16 %v572, %v571
        %v578 = vsel %vm507, %v456, 0
        %v581 = vsel %vm507, %v457, 0
        %v584 = vsel %vm507, %v458, 0
        %v587 = vsel %vm507, %v459, 0
        %v590 = vsel %vm507, %v460, 0
        %v593 = vsel %vm507, %v461, 0
        %v596 = vsel %vm507, %v462, 0
        %598 = vmatprep.subr.bf16.mxu0 0
        %599 = vmatpush1.bf16.msra.mxu0 %v573
        %600 = vmatprep.subr.bf16.mxu0 0
        %601 = vmatpush1.bf16.msra.mxu0 %v574
        %602 = vmatprep.subr.bf16.mxu0 0
        %603 = vmatpush1.bf16.msra.mxu0 0
        %604 = vmatprep.subr.bf16.mxu0 0
        %605 = vmatpush1.bf16.msra.mxu0 0
        %606 = vmatprep.subr.bf16.mxu0 0
        %607 = vmatpush1.bf16.msra.mxu0 0
        %608 = vmatprep.subr.bf16.mxu0 0
        %609 = vmatpush1.bf16.msra.mxu0 0
        %610 = vmatprep.subr.bf16.mxu0 0
        %611 = vmatpush1.bf16.msra.mxu0 0
        %612 = vmatprep.subr.bf16.mxu0 0
        %613 = vmatpush1.bf16.msra.mxu0 0
        %614 = vmatprep.subr.bf16.mxu0 0
        %615 = vmatpush1.bf16.msra.mxu0 0
        %616 = vmatprep.subr.bf16.mxu0 0
        %617 = vmatpush1.bf16.msra.mxu0 0
        %618 = vmatprep.subr.bf16.mxu0 0
        %619 = vmatpush1.bf16.msra.mxu0 0
        %620 = vmatprep.subr.bf16.mxu0 0
        %621 = vmatpush1.bf16.msra.mxu0 0
        %622 = vmatprep.subr.bf16.mxu0 0
        %623 = vmatpush1.bf16.msra.mxu0 0
        %624 = vmatprep.subr.bf16.mxu0 0
        %625 = vmatpush1.bf16.msra.mxu0 0
        %626 = vmatprep.subr.bf16.mxu0 0
        %627 = vmatpush1.bf16.msra.mxu0 0
        %628 = vmatprep.subr.bf16.mxu0 0
        %629 = vmatpush1.bf16.msra.mxu0 0
        %630 = vmatprep.mubr.bf16.mxu0 0
        %631 = vmatmul.mubr.bf16.gmra.mrb[0].mxu0 %v578
        %v632 = vpop.f32.mrb[0].mxu0
        %v633 = vadd.f32 %v563, %v632
        %v634 = vpop.f32.mrb[0].mxu0
        %v635 = vpop.f32.mrb[0].mxu0
        %v636 = vadd.f32 %v563, %v635
        %v637 = vpop.f32.mrb[0].mxu0
        %638 = vmatprep.mubr.bf16.mxu0 0
        %639 = vmatmul.mubr.bf16.gmra.mrb[0].mxu0 %v581
        %v640 = vpop.f32.mrb[0].mxu0
        %v641 = vadd.f32 %v563, %v640
        %v642 = vpop.f32.mrb[0].mxu0
        %v643 = vpop.f32.mrb[0].mxu0
        %v644 = vadd.f32 %v563, %v643
        %v645 = vpop.f32.mrb[0].mxu0
        %646 = vmatprep.mubr.bf16.mxu0 0
        %647 = vmatmul.mubr.bf16.gmra.mrb[0].mxu0 %v584
        %v648 = vpop.f32.mrb[0].mxu0
        %v649 = vadd.f32 %v563, %v648
        %v650 = vpop.f32.mrb[0].mxu0
        %v651 = vpop.f32.mrb[0].mxu0
        %v652 = vadd.f32 %v563, %v651
        %v653 = vpop.f32.mrb[0].mxu0
        %654 = vmatprep.mubr.bf16.mxu0 0
        %655 = vmatmul.mubr.bf16.gmra.mrb[0].mxu0 %v587
        %v656 = vpop.f32.mrb[0].mxu0
        %v657 = vadd.f32 %v563, %v656
        %v658 = vpop.f32.mrb[0].mxu0
        %v659 = vpop.f32.mrb[0].mxu0
        %v660 = vadd.f32 %v563, %v659
        %v661 = vpop.f32.mrb[0].mxu0
        %662 = vmatprep.mubr.bf16.mxu0 0
        %663 = vmatmul.mubr.bf16.gmra.mrb[0].mxu0 %v590
        %v664 = vpop.f32.mrb[0].mxu0
        %v665 = vadd.f32 %v563, %v664
        %v666 = vpop.f32.mrb[0].mxu0
        %v667 = vpop.f32.mrb[0].mxu0
        %v668 = vadd.f32 %v563, %v667
        %v669 = vpop.f32.mrb[0].mxu0
        %670 = vmatprep.mubr.bf16.mxu0 0
        %671 = vmatmul.mubr.bf16.gmra.mrb[0].mxu0 %v593
        %v672 = vpop.f32.mrb[0].mxu0
        %v673 = vadd.f32 %v563, %v672
        %v674 = vpop.f32.mrb[0].mxu0
        %v675 = vpop.f32.mrb[0].mxu0
        %v676 = vadd.f32 %v563, %v675
        %v677 = vpop.f32.mrb[0].mxu0
        %678 = vmatprep.mubr.bf16.mxu0 0
        %679 = vmatmul.mubr.bf16.gmra.mrb[0].mxu0 %v596
        %v680 = vpop.f32.mrb[0].mxu0
        %v681 = vadd.f32 %v563, %v680
        %v682 = vpop.f32.mrb[0].mxu0
        %v683 = vpop.f32.mrb[0].mxu0
        %v684 = vadd.f32 %v563, %v683
        %v685 = vpop.f32.mrb[0].mxu0
        %686 = vdwg.mxu0
        %v687 = vpack.c.bf16 %v636, %v633
        %v688 = vpack.c.bf16 %v644, %v641
        %v689 = vpack.c.bf16 %v652, %v649
        %v690 = vpack.c.bf16 %v657, %v657
        %v691 = vpack.c.bf16 %v665, %v660
        %v692 = vpack.c.bf16 %v673, %v668
        %v693 = vpack.c.bf16 %v681, %v676
        %v694 = vpack.c.bf16 %v684, %v684
        %v695 = vld [vmem:[%s7] sm:$0xf]
        %v696 = vld [vmem:[%s7 + $0x4] sm:$0xf]
        %v697 = vld [vmem:[%s7 + $0x8] sm:$0xf]
        %v698 = vld [vmem:[%s7 + $0xc] sm:$0xf]
        %v699 = vld [vmem:[%s8] sm:$0x1]
        %v701 = vlaneseq
        %v702 = vshrl.u32 %v701, 7
        %v703 = vsub.s32 0, %v702
        %v704 = vrot.slane %v699, %v703
        %v710 = vunpack.c.l.b16 %v695
        %v711 = vunpack.c.l.b16 %v696
        %v712 = vunpack.c.l.b16 %v697
        %v713 = vunpack.c.l.b16 %v698
        %v714 = vpack.c.b16 %v711, %v710
        %v715 = vpack.c.b16 %v713, %v712
        %v719 = vsel %vm507, %v477, 0
        %v722 = vsel %vm507, %v478, 0
        %v725 = vsel %vm507, %v479, 0
        %v728 = vsel %vm507, %v480, 0
        %v731 = vsel %vm507, %v481, 0
        %v734 = vsel %vm507, %v482, 0
        %v737 = vsel %vm507, %v483, 0
        %739 = vmatprep.subr.bf16.mxu0 0
        %740 = vmatpush1.bf16.msra.mxu0 %v714
        %741 = vmatprep.subr.bf16.mxu0 0
        %742 = vmatpush1.bf16.msra.mxu0 %v715
        %743 = vmatprep.subr.bf16.mxu0 0
        %744 = vmatpush1.bf16.msra.mxu0 0
        %745 = vmatprep.subr.bf16.mxu0 0
        %746 = vmatpush1.bf16.msra.mxu0 0
        %747 = vmatprep.subr.bf16.mxu0 0
        %748 = vmatpush1.bf16.msra.mxu0 0
        %749 = vmatprep.subr.bf16.mxu0 0
        %750 = vmatpush1.bf16.msra.mxu0 0
        %751 = vmatprep.subr.bf16.mxu0 0
        %752 = vmatpush1.bf16.msra.mxu0 0
        %753 = vmatprep.subr.bf16.mxu0 0
        %754 = vmatpush1.bf16.msra.mxu0 0
        %755 = vmatprep.subr.bf16.mxu0 0
        %756 = vmatpush1.bf16.msra.mxu0 0
        %757 = vmatprep.subr.bf16.mxu0 0
        %758 = vmatpush1.bf16.msra.mxu0 0
        %759 = vmatprep.subr.bf16.mxu0 0
        %760 = vmatpush1.bf16.msra.mxu0 0
        %761 = vmatprep.subr.bf16.mxu0 0
        %762 = vmatpush1.bf16.msra.mxu0 0
        %763 = vmatprep.subr.bf16.mxu0 0
        %764 = vmatpush1.bf16.msra.mxu0 0
        %765 = vmatprep.subr.bf16.mxu0 0
        %766 = vmatpush1.bf16.msra.mxu0 0
        %767 = vmatprep.subr.bf16.mxu0 0
        %768 = vmatpush1.bf16.msra.mxu0 0
        %769 = vmatprep.subr.bf16.mxu0 0
        %770 = vmatpush1.bf16.msra.mxu0 0
        %771 = vmatprep.mubr.bf16.mxu0 0
        %772 = vmatmul.mubr.bf16.gmra.mrb[0].mxu0 %v719
        %v773 = vpop.f32.mrb[0].mxu0
        %v774 = vadd.f32 %v704, %v773
        %v775 = vpop.f32.mrb[0].mxu0
        %v776 = vpop.f32.mrb[0].mxu0
        %v777 = vadd.f32 %v704, %v776
        %v778 = vpop.f32.mrb[0].mxu0
        %779 = vmatprep.mubr.bf16.mxu0 0
        %780 = vmatmul.mubr.bf16.gmra.mrb[0].mxu0 %v722
        %v781 = vpop.f32.mrb[0].mxu0
        %v782 = vadd.f32 %v704, %v781
        %v783 = vpop.f32.mrb[0].mxu0
        %v784 = vpop.f32.mrb[0].mxu0
        %v785 = vadd.f32 %v704, %v784
        %v786 = vpop.f32.mrb[0].mxu0
        %787 = vmatprep.mubr.bf16.mxu0 0
        %788 = vmatmul.mubr.bf16.gmra.mrb[0].mxu0 %v725
        %v789 = vpop.f32.mrb[0].mxu0
        %v790 = vadd.f32 %v704, %v789
        %v791 = vpop.f32.mrb[0].mxu0
        %v792 = vpop.f32.mrb[0].mxu0
        %v793 = vadd.f32 %v704, %v792
        %v794 = vpop.f32.mrb[0].mxu0
        %795 = vmatprep.mubr.bf16.mxu0 0
        %796 = vmatmul.mubr.bf16.gmra.mrb[0].mxu0 %v728
        %v797 = vpop.f32.mrb[0].mxu0
        %v798 = vadd.f32 %v704, %v797
        %v799 = vpop.f32.mrb[0].mxu0
        %v800 = vpop.f32.mrb[0].mxu0
        %v801 = vadd.f32 %v704, %v800
        %v802 = vpop.f32.mrb[0].mxu0
        %803 = vmatprep.mubr.bf16.mxu0 0
        %804 = vmatmul.mubr.bf16.gmra.mrb[0].mxu0 %v731
        %v805 = vpop.f32.mrb[0].mxu0
        %v806 = vadd.f32 %v704, %v805
        %v807 = vpop.f32.mrb[0].mxu0
        %v808 = vpop.f32.mrb[0].mxu0
        %v809 = vadd.f32 %v704, %v808
        %v810 = vpop.f32.mrb[0].mxu0
        %811 = vmatprep.mubr.bf16.mxu0 0
        %812 = vmatmul.mubr.bf16.gmra.mrb[0].mxu0 %v734
        %v813 = vpop.f32.mrb[0].mxu0
        %v814 = vadd.f32 %v704, %v813
        %v815 = vpop.f32.mrb[0].mxu0
        %v816 = vpop.f32.mrb[0].mxu0
        %v817 = vadd.f32 %v704, %v816
        %v818 = vpop.f32.mrb[0].mxu0
        %819 = vmatprep.mubr.bf16.mxu0 0
        %820 = vmatmul.mubr.bf16.gmra.mrb[0].mxu0 %v737
        %v821 = vpop.f32.mrb[0].mxu0
        %v822 = vadd.f32 %v704, %v821
        %v823 = vpop.f32.mrb[0].mxu0
        %v824 = vpop.f32.mrb[0].mxu0
        %v825 = vadd.f32 %v704, %v824
        %v826 = vpop.f32.mrb[0].mxu0
        %827 = vdwg.mxu0
        %v828 = vpack.c.bf16 %v777, %v774
        %v829 = vpack.c.bf16 %v785, %v782
        %v830 = vpack.c.bf16 %v793, %v790
        %v831 = vpack.c.bf16 %v798, %v798
        %v832 = vpack.c.bf16 %v806, %v801
        %v833 = vpack.c.bf16 %v814, %v809
        %v834 = vpack.c.bf16 %v822, %v817
        %v835 = vpack.c.bf16 %v825, %v825
        %v836 = vlaneseq
        %v837 = vand.u32 %v836, 127
        %vm838 = vcmp.ge.s32.totalorder %v837, 7
        %vm839 = vcmask 64512
        %v841 = vsel %vm839, %v552, 0
        %v844 = vsel %vm839, %v687, 0
        %v847 = vsel %vm839, %v688, 0
        %v850 = vsel %vm839, %v689, 0
        %v853 = vsel %vm839, %v690, 0
        %855 = vmatprep.subr.bf16.mxu0 0
        %856 = vmatpush1.bf16.xpose.msra.mxu0 %v844
        %857 = vmatprep.subr.bf16.mxu0 0
        %858 = vmatpush1.bf16.xpose.msra.mxu0 %v847
        %859 = vmatprep.subr.bf16.mxu0 0
        %860 = vmatpush1.bf16.xpose.msra.mxu0 %v850
        %861 = vmatprep.subr.bf16.mxu0 0
        %862 = vmatpush1.bf16.xpose.msra.mxu0 %v853
        %863 = vmatprep.subr.bf16.mxu0 0
        %864 = vmatpush1.bf16.xpose.msra.mxu0 0
        %865 = vmatprep.subr.bf16.mxu0 0
        %866 = vmatpush1.bf16.xpose.msra.mxu0 0
        %867 = vmatprep.subr.bf16.mxu0 0
        %868 = vmatpush1.bf16.xpose.msra.mxu0 0
        %869 = vmatprep.subr.bf16.mxu0 0
        %870 = vmatpush1.bf16.xpose.msra.mxu0 0
        %871 = vmatprep.subr.bf16.mxu0 0
        %872 = vmatpush1.bf16.xpose.msra.mxu0 0
        %873 = vmatprep.subr.bf16.mxu0 0
        %874 = vmatpush1.bf16.xpose.msra.mxu0 0
        %875 = vmatprep.subr.bf16.mxu0 0
        %876 = vmatpush1.bf16.xpose.msra.mxu0 0
        %877 = vmatprep.subr.bf16.mxu0 0
        %878 = vmatpush1.bf16.xpose.msra.mxu0 0
        %879 = vmatprep.subr.bf16.mxu0 0
        %880 = vmatpush1.bf16.xpose.msra.mxu0 0
        %881 = vmatprep.subr.bf16.mxu0 0
        %882 = vmatpush1.bf16.xpose.msra.mxu0 0
        %883 = vmatprep.subr.bf16.mxu0 0
        %884 = vmatpush1.bf16.xpose.msra.mxu0 0
        %885 = vmatprep.subr.bf16.mxu0 0
        %886 = vmatpush1.bf16.xpose.msra.mxu0 0
        %887 = vmatprep.mubr.bf16.mxu0 0
        %888 = vmatmul.mubr.bf16.gmra.mrb[0].mxu0 %v841
        %v889 = vpop.f32.mrb[0].mxu0
        %v890 = vadd.f32 0.0, %v889
        %v891 = vpop.f32.mrb[0].mxu0
        %v892 = vpop.f32.mrb[0].mxu0
        %v893 = vpop.f32.mrb[0].mxu0
        %894 = vdwg.mxu0
        %v896 = vsel %vm839, %v553, 0
        %v899 = vsel %vm839, %v691, 0
        %v902 = vsel %vm839, %v692, 0
        %v905 = vsel %vm839, %v693, 0
        %v908 = vsel %vm839, %v694, 0
        %910 = vmatprep.subr.bf16.mxu0 0
        %911 = vmatpush1.bf16.xpose.msra.mxu0 %v899
        %912 = vmatprep.subr.bf16.mxu0 0
        %913 = vmatpush1.bf16.xpose.msra.mxu0 %v902
        %914 = vmatprep.subr.bf16.mxu0 0
        %915 = vmatpush1.bf16.xpose.msra.mxu0 %v905
        %916 = vmatprep.subr.bf16.mxu0 0
        %917 = vmatpush1.bf16.xpose.msra.mxu0 %v908
        %918 = vmatprep.subr.bf16.mxu0 0
        %919 = vmatpush1.bf16.xpose.msra.mxu0 0
        %920 = vmatprep.subr.bf16.mxu0 0
        %921 = vmatpush1.bf16.xpose.msra.mxu0 0
        %922 = vmatprep.subr.bf16.mxu0 0
        %923 = vmatpush1.bf16.xpose.msra.mxu0 0
        %924 = vmatprep.subr.bf16.mxu0 0
        %925 = vmatpush1.bf16.xpose.msra.mxu0 0
        %926 = vmatprep.subr.bf16.mxu0 0
        %927 = vmatpush1.bf16.xpose.msra.mxu0 0
        %928 = vmatprep.subr.bf16.mxu0 0
        %929 = vmatpush1.bf16.xpose.msra.mxu0 0
        %930 = vmatprep.subr.bf16.mxu0 0
        %931 = vmatpush1.bf16.xpose.msra.mxu0 0
        %932 = vmatprep.subr.bf16.mxu0 0
        %933 = vmatpush1.bf16.xpose.msra.mxu0 0
        %934 = vmatprep.subr.bf16.mxu0 0
        %935 = vmatpush1.bf16.xpose.msra.mxu0 0
        %936 = vmatprep.subr.bf16.mxu0 0
        %937 = vmatpush1.bf16.xpose.msra.mxu0 0
        %938 = vmatprep.subr.bf16.mxu0 0
        %939 = vmatpush1.bf16.xpose.msra.mxu0 0
        %940 = vmatprep.subr.bf16.mxu0 0
        %941 = vmatpush1.bf16.xpose.msra.mxu0 0
        %942 = vmatprep.mubr.bf16.mxu0 0
        %943 = vmatmul.mubr.bf16.gmra.mrb[0].mxu0 %v896
        %v944 = vpop.f32.mrb[0].mxu0
        %v945 = vadd.f32 0.0, %v944
        %v946 = vpop.f32.mrb[0].mxu0
        %v947 = vpop.f32.mrb[0].mxu0
        %v948 = vpop.f32.mrb[0].mxu0
        %949 = vdwg.mxu0
        %v950 = vsel %vm838, %v890, -1e+30
        %v951 = vsel %vm838, %v945, -1e+30
        %vm952 = vcmask 457728
        %v953 = vsel %vm952, %v950, -inf
        %954 = vmax.xlane.f32.xlu0 %v953
        %v955 = vpop.xlane.xlu0 %954
        %v956 = vsel %vm952, %v951, -inf
        %957 = vmax.xlane.f32.xlu0 %v956
        %v958 = vpop.xlane.xlu0 %957
        %v959 = vsub.f32 %v950, %v955
        %v960 = vsub.f32 %v951, %v958
        %v961 = vmul.f32 %v959, 1.442695
        %v962 = vpow.pop %v961
        %v963 = vmul.f32 %v960, 1.442695
        %v964 = vpow.pop %v963
        %v965 = vsel %vm952, %v962, 0.0
        %966 = vadd.xlane.f32.xlu0 %v965
        %v967 = vpop.xlane.xlu0 %966
        %v968 = vsel %vm952, %v964, 0.0
        %969 = vadd.xlane.f32.xlu0 %v968
        %v970 = vpop.xlane.xlu0 %969
        %v971 = vsel %vm952, %v962, -inf
        %972 = vmax.xlane.f32.xlu0 %v971
        %v973 = vpop.xlane.xlu0 %972
        %v974 = vsel %vm952, %v964, -inf
        %975 = vmax.xlane.f32.xlu0 %v974
        %v976 = vpop.xlane.xlu0 %975
        %v977 = vadd.f32 %v973, 0.0
        %v978 = vadd.f32 %v976, 0.0
        %vm979 = vcmp.eq.f32.partialorder %v962, %v973
        %vm980 = vcmp.eq.f32.partialorder %v964, %v976
        %v981 = vsel %vm979, -1.0, %v962
        %v982 = vsel %vm980, -1.0, %v964
        %v983 = vsel %vm952, %v981, -inf
        %984 = vmax.xlane.f32.xlu0 %v983
        %v985 = vpop.xlane.xlu0 %984
        %v986 = vsel %vm952, %v982, -inf
        %987 = vmax.xlane.f32.xlu0 %v986
        %v988 = vpop.xlane.xlu0 %987
        %v989 = vadd.f32 %v977, %v985
        %v990 = vadd.f32 %v978, %v988
        %vm991 = vcmp.eq.f32.partialorder %v981, %v985
        %vm992 = vcmp.eq.f32.partialorder %v982, %v988
        %v993 = vsel %vm991, -1.0, %v981
        %v994 = vsel %vm992, -1.0, %v982
        %v995 = vsel %vm952, %v993, -inf
        %996 = vmax.xlane.f32.xlu0 %v995
        %v997 = vpop.xlane.xlu0 %996
        %v998 = vsel %vm952, %v994, -inf
        %999 = vmax.xlane.f32.xlu0 %v998
        %v1000 = vpop.xlane.xlu0 %999
        %v1001 = vadd.f32 %v989, %v997
        %v1002 = vadd.f32 %v990, %v1000
        %vm1003 = vcmp.eq.f32.partialorder %v993, %v997
        %vm1004 = vcmp.eq.f32.partialorder %v994, %v1000
        %v1005 = vsel %vm1003, -1.0, %v993
        %v1006 = vsel %vm1004, -1.0, %v994
        %v1007 = vsel %vm952, %v1005, -inf
        %1008 = vmax.xlane.f32.xlu0 %v1007
        %v1009 = vpop.xlane.xlu0 %1008
        %v1010 = vsel %vm952, %v1006, -inf
        %1011 = vmax.xlane.f32.xlu0 %v1010
        %v1012 = vpop.xlane.xlu0 %1011
        %v1013 = vadd.f32 %v1001, %v1009
        %v1014 = vadd.f32 %v1002, %v1012
        %vm1015 = vcmp.eq.f32.partialorder %v1005, %v1009
        %vm1016 = vcmp.eq.f32.partialorder %v1006, %v1012
        %v1017 = vsel %vm1015, -1.0, %v1005
        %v1018 = vsel %vm1016, -1.0, %v1006
        %v1019 = vsel %vm952, %v1017, -inf
        %1020 = vmax.xlane.f32.xlu0 %v1019
        %v1021 = vpop.xlane.xlu0 %1020
        %v1022 = vsel %vm952, %v1018, -inf
        %1023 = vmax.xlane.f32.xlu0 %v1022
        %v1024 = vpop.xlane.xlu0 %1023
        %v1025 = vadd.f32 %v1013, %v1021
        %v1026 = vadd.f32 %v1014, %v1024
        %v1027 = vmul.f32 %v967, 0.1
        %v1028 = vmul.f32 %v970, 0.1
        %vm1029 = vcmp.gt.f32.partialorder %v1025, %v1027
        %vm1030 = vcmp.gt.f32.partialorder %v1026, %v1028
        %v1031 = vsel %vm1029, 1, 0
        %v1032 = vsel %vm1030, 1, 0
        %vm1033 = vcmp.eq.s32.totalorder %v1031, 1
        %vm1034 = vcmp.eq.s32.totalorder %v1032, 1
        %vm1035 = vmor %vm838, %vm1033
        %vm1036 = vmor %vm838, %vm1034
        %v1037 = vsel %vm1035, -1e+30, %v890
        %v1038 = vsel %vm1036, -1e+30, %v945
        %v1039 = vsel %vm952, %v1037, -inf
        %1040 = vmax.xlane.f32.xlu0 %v1039
        %v1041 = vpop.xlane.xlu0 %1040
        %v1042 = vsel %vm952, %v1038, -inf
        %1043 = vmax.xlane.f32.xlu0 %v1042
        %v1044 = vpop.xlane.xlu0 %1043
        %v1045 = vmax.f32 %v955, %v1041
        %v1046 = vmax.f32 %v958, %v1044
        %v1047 = vsub.f32 %v1037, %v1045
        %v1048 = vsub.f32 %v1038, %v1046
        %v1049 = vmul.f32 %v1047, 1.442695
        %v1050 = vpow.pop %v1049
        %v1051 = vmul.f32 %v1048, 1.442695
        %v1052 = vpow.pop %v1051
        %v1053 = vsub.f32 %v955, %v1045
        %v1054 = vsub.f32 %v958, %v1046
        %v1055 = vmul.f32 %v1053, 1.442695
        %v1056 = vpow.pop %v1055
        %v1057 = vmul.f32 %v1054, 1.442695
        %v1058 = vpow.pop %v1057
        %v1059 = vmul.f32 %v962, %v1056
        %v1060 = vmul.f32 %v964, %v1058
        %v1061 = vadd.f32 %v1050, %v1059
        %v1062 = vadd.f32 %v1052, %v1060
        %v1063 = vsel %vm952, %v1050, 0.0
        %1064 = vadd.xlane.f32.xlu0 %v1063
        %v1065 = vpop.xlane.xlu0 %1064
        %v1066 = vsel %vm952, %v1052, 0.0
        %1067 = vadd.xlane.f32.xlu0 %v1066
        %v1068 = vpop.xlane.xlu0 %1067
        %v1069 = vmul.f32 %v967, %v1056
        %v1070 = vmul.f32 %v970, %v1058
        %v1071 = vadd.f32 %v1065, %v1069
        %v1072 = vadd.f32 %v1068, %v1070
        %v1073 = vrcp.pop %v1071
        %v1074 = vrcp.pop %v1072
        %v1075 = vmul.f32 %v1061, %v1073
        %v1076 = vmul.f32 %v1062, %v1074
        %v1077 = vpack.c.bf16 %v1075, %v1075
        %v1078 = vpack.c.bf16 %v1076, %v1076
        %v1080 = vsel %vm952, %v1077, 0
        %vm1082 = vcmask 1043456
        %v1084 = vsel %vm1082, %v831, 0
        %1086 = vmatprep.subr.bf16.mxu0 0
        %1087 = vmatpush1.bf16.msra.mxu0 %v828
        %1088 = vmatprep.subr.bf16.mxu0 0
        %1089 = vmatpush1.bf16.msra.mxu0 %v829
        %1090 = vmatprep.subr.bf16.mxu0 0
        %1091 = vmatpush1.bf16.msra.mxu0 %v830
        %1092 = vmatprep.subr.bf16.mxu0 0
        %1093 = vmatpush1.bf16.msra.mxu0 %v1084
        %1094 = vmatprep.subr.bf16.mxu0 0
        %1095 = vmatpush1.bf16.msra.mxu0 0
        %1096 = vmatprep.subr.bf16.mxu0 0
        %1097 = vmatpush1.bf16.msra.mxu0 0
        %1098 = vmatprep.subr.bf16.mxu0 0
        %1099 = vmatpush1.bf16.msra.mxu0 0
        %1100 = vmatprep.subr.bf16.mxu0 0
        %1101 = vmatpush1.bf16.msra.mxu0 0
        %1102 = vmatprep.subr.bf16.mxu0 0
        %1103 = vmatpush1.bf16.msra.mxu0 0
        %1104 = vmatprep.subr.bf16.mxu0 0
        %1105 = vmatpush1.bf16.msra.mxu0 0
        %1106 = vmatprep.subr.bf16.mxu0 0
        %1107 = vmatpush1.bf16.msra.mxu0 0
        %1108 = vmatprep.subr.bf16.mxu0 0
        %1109 = vmatpush1.bf16.msra.mxu0 0
        %1110 = vmatprep.subr.bf16.mxu0 0
        %1111 = vmatpush1.bf16.msra.mxu0 0
        %1112 = vmatprep.subr.bf16.mxu0 0
        %1113 = vmatpush1.bf16.msra.mxu0 0
        %1114 = vmatprep.subr.bf16.mxu0 0
        %1115 = vmatpush1.bf16.msra.mxu0 0
        %1116 = vmatprep.subr.bf16.mxu0 0
        %1117 = vmatpush1.bf16.msra.mxu0 0
        %1118 = vmatprep.mubr.bf16.mxu0 0
        %1119 = vmatmul.mubr.bf16.gmra.mrb[0].mxu0 %v1080
        %v1120 = vpop.f32.mrb[0].mxu0
        %v1121 = vadd.f32 0.0, %v1120
        %v1122 = vpop.f32.mrb[0].mxu0
        %v1123 = vpop.f32.mrb[0].mxu0
        %v1124 = vpop.f32.mrb[0].mxu0
        %1125 = vdwg.mxu0
        %v1127 = vsel %vm952, %v1078, 0
        %v1130 = vsel %vm1082, %v835, 0
        %1132 = vmatprep.subr.bf16.mxu0 0
        %1133 = vmatpush1.bf16.msra.mxu0 %v832
        %1134 = vmatprep.subr.bf16.mxu0 0
        %1135 = vmatpush1.bf16.msra.mxu0 %v833
        %1136 = vmatprep.subr.bf16.mxu0 0
        %1137 = vmatpush1.bf16.msra.mxu0 %v834
        %1138 = vmatprep.subr.bf16.mxu0 0
        %1139 = vmatpush1.bf16.msra.mxu0 %v1130
        %1140 = vmatprep.subr.bf16.mxu0 0
        %1141 = vmatpush1.bf16.msra.mxu0 0
        %1142 = vmatprep.subr.bf16.mxu0 0
        %1143 = vmatpush1.bf16.msra.mxu0 0
        %1144 = vmatprep.subr.bf16.mxu0 0
        %1145 = vmatpush1.bf16.msra.mxu0 0
        %1146 = vmatprep.subr.bf16.mxu0 0
        %1147 = vmatpush1.bf16.msra.mxu0 0
        %1148 = vmatprep.subr.bf16.mxu0 0
        %1149 = vmatpush1.bf16.msra.mxu0 0
        %1150 = vmatprep.subr.bf16.mxu0 0
        %1151 = vmatpush1.bf16.msra.mxu0 0
        %1152 = vmatprep.subr.bf16.mxu0 0
        %1153 = vmatpush1.bf16.msra.mxu0 0
        %1154 = vmatprep.subr.bf16.mxu0 0
        %1155 = vmatpush1.bf16.msra.mxu0 0
        %1156 = vmatprep.subr.bf16.mxu0 0
        %1157 = vmatpush1.bf16.msra.mxu0 0
        %1158 = vmatprep.subr.bf16.mxu0 0
        %1159 = vmatpush1.bf16.msra.mxu0 0
        %1160 = vmatprep.subr.bf16.mxu0 0
        %1161 = vmatpush1.bf16.msra.mxu0 0
        %1162 = vmatprep.subr.bf16.mxu0 0
        %1163 = vmatpush1.bf16.msra.mxu0 0
        %1164 = vmatprep.mubr.bf16.mxu0 0
        %1165 = vmatmul.mubr.bf16.gmra.mrb[0].mxu0 %v1127
        %v1166 = vpop.f32.mrb[0].mxu0
        %v1167 = vadd.f32 0.0, %v1166
        %v1168 = vpop.f32.mrb[0].mxu0
        %v1169 = vpop.f32.mrb[0].mxu0
        %v1170 = vpop.f32.mrb[0].mxu0
        %1171 = vdwg.mxu0
        %1173 = vrot.lane.b32.xlu0 %v552, 120
        %v1174 = vpop.permute.xlu0 %1173
        %1179 = vrot.lane.b32.xlu0 %v687, 120
        %v1180 = vpop.permute.xlu0 %1179
        %1181 = vrot.lane.b32.xlu0 %v688, 120
        %v1182 = vpop.permute.xlu0 %1181
        %1183 = vrot.lane.b32.xlu0 %v689, 120
        %v1184 = vpop.permute.xlu0 %1183
        %1185 = vrot.lane.b32.xlu0 %v690, 120
        %v1186 = vpop.permute.xlu0 %1185
        %v1188 = vsel %vm839, %v1174, 0
        %v1191 = vsel %vm839, %v1180, 0
        %v1194 = vsel %vm839, %v1182, 0
        %v1197 = vsel %vm839, %v1184, 0
        %v1200 = vsel %vm839, %v1186, 0
        %1202 = vmatprep.subr.bf16.mxu0 0
        %1203 = vmatpush1.bf16.xpose.msra.mxu0 %v1191
        %1204 = vmatprep.subr.bf16.mxu0 0
        %1205 = vmatpush1.bf16.xpose.msra.mxu0 %v1194
        %1206 = vmatprep.subr.bf16.mxu0 0
        %1207 = vmatpush1.bf16.xpose.msra.mxu0 %v1197
        %1208 = vmatprep.subr.bf16.mxu0 0
        %1209 = vmatpush1.bf16.xpose.msra.mxu0 %v1200
        %1210 = vmatprep.subr.bf16.mxu0 0
        %1211 = vmatpush1.bf16.xpose.msra.mxu0 0
        %1212 = vmatprep.subr.bf16.mxu0 0
        %1213 = vmatpush1.bf16.xpose.msra.mxu0 0
        %1214 = vmatprep.subr.bf16.mxu0 0
        %1215 = vmatpush1.bf16.xpose.msra.mxu0 0
        %1216 = vmatprep.subr.bf16.mxu0 0
        %1217 = vmatpush1.bf16.xpose.msra.mxu0 0
        %1218 = vmatprep.subr.bf16.mxu0 0
        %1219 = vmatpush1.bf16.xpose.msra.mxu0 0
        %1220 = vmatprep.subr.bf16.mxu0 0
        %1221 = vmatpush1.bf16.xpose.msra.mxu0 0
        %1222 = vmatprep.subr.bf16.mxu0 0
        %1223 = vmatpush1.bf16.xpose.msra.mxu0 0
        %1224 = vmatprep.subr.bf16.mxu0 0
        %1225 = vmatpush1.bf16.xpose.msra.mxu0 0
        %1226 = vmatprep.subr.bf16.mxu0 0
        %1227 = vmatpush1.bf16.xpose.msra.mxu0 0
        %1228 = vmatprep.subr.bf16.mxu0 0
        %1229 = vmatpush1.bf16.xpose.msra.mxu0 0
        %1230 = vmatprep.subr.bf16.mxu0 0
        %1231 = vmatpush1.bf16.xpose.msra.mxu0 0
        %1232 = vmatprep.subr.bf16.mxu0 0
        %1233 = vmatpush1.bf16.xpose.msra.mxu0 0
        %1234 = vmatprep.mubr.bf16.mxu0 0
        %1235 = vmatmul.mubr.bf16.gmra.mrb[0].mxu0 %v1188
        %v1236 = vpop.f32.mrb[0].mxu0
        %v1237 = vadd.f32 0.0, %v1236
        %v1238 = vpop.f32.mrb[0].mxu0
        %v1239 = vpop.f32.mrb[0].mxu0
        %v1240 = vpop.f32.mrb[0].mxu0
        %1241 = vdwg.mxu0
        %1243 = vrot.lane.b32.xlu0 %v553, 120
        %v1244 = vpop.permute.xlu0 %1243
        %1249 = vrot.lane.b32.xlu0 %v691, 120
        %v1250 = vpop.permute.xlu0 %1249
        %1251 = vrot.lane.b32.xlu0 %v692, 120
        %v1252 = vpop.permute.xlu0 %1251
        %1253 = vrot.lane.b32.xlu0 %v693, 120
        %v1254 = vpop.permute.xlu0 %1253
        %1255 = vrot.lane.b32.xlu0 %v694, 120
        %v1256 = vpop.permute.xlu0 %1255
        %v1258 = vsel %vm839, %v1244, 0
        %v1261 = vsel %vm839, %v1250, 0
        %v1264 = vsel %vm839, %v1252, 0
        %v1267 = vsel %vm839, %v1254, 0
        %v1270 = vsel %vm839, %v1256, 0
        %1272 = vmatprep.subr.bf16.mxu0 0
        %1273 = vmatpush1.bf16.xpose.msra.mxu0 %v1261
        %1274 = vmatprep.subr.bf16.mxu0 0
        %1275 = vmatpush1.bf16.xpose.msra.mxu0 %v1264
        %1276 = vmatprep.subr.bf16.mxu0 0
        %1277 = vmatpush1.bf16.xpose.msra.mxu0 %v1267
        %1278 = vmatprep.subr.bf16.mxu0 0
        %1279 = vmatpush1.bf16.xpose.msra.mxu0 %v1270
        %1280 = vmatprep.subr.bf16.mxu0 0
        %1281 = vmatpush1.bf16.xpose.msra.mxu0 0
        %1282 = vmatprep.subr.bf16.mxu0 0
        %1283 = vmatpush1.bf16.xpose.msra.mxu0 0
        %1284 = vmatprep.subr.bf16.mxu0 0
        %1285 = vmatpush1.bf16.xpose.msra.mxu0 0
        %1286 = vmatprep.subr.bf16.mxu0 0
        %1287 = vmatpush1.bf16.xpose.msra.mxu0 0
        %1288 = vmatprep.subr.bf16.mxu0 0
        %1289 = vmatpush1.bf16.xpose.msra.mxu0 0
        %1290 = vmatprep.subr.bf16.mxu0 0
        %1291 = vmatpush1.bf16.xpose.msra.mxu0 0
        %1292 = vmatprep.subr.bf16.mxu0 0
        %1293 = vmatpush1.bf16.xpose.msra.mxu0 0
        %1294 = vmatprep.subr.bf16.mxu0 0
        %1295 = vmatpush1.bf16.xpose.msra.mxu0 0
        %1296 = vmatprep.subr.bf16.mxu0 0
        %1297 = vmatpush1.bf16.xpose.msra.mxu0 0
        %1298 = vmatprep.subr.bf16.mxu0 0
        %1299 = vmatpush1.bf16.xpose.msra.mxu0 0
        %1300 = vmatprep.subr.bf16.mxu0 0
        %1301 = vmatpush1.bf16.xpose.msra.mxu0 0
        %1302 = vmatprep.subr.bf16.mxu0 0
        %1303 = vmatpush1.bf16.xpose.msra.mxu0 0
        %1304 = vmatprep.mubr.bf16.mxu0 0
        %1305 = vmatmul.mubr.bf16.gmra.mrb[0].mxu0 %v1258
        %v1306 = vpop.f32.mrb[0].mxu0
        %v1307 = vadd.f32 0.0, %v1306
        %v1308 = vpop.f32.mrb[0].mxu0
        %v1309 = vpop.f32.mrb[0].mxu0
        %v1310 = vpop.f32.mrb[0].mxu0
        %1311 = vdwg.mxu0
        %v1312 = vsel %vm838, %v1237, -1e+30
        %v1313 = vsel %vm838, %v1307, -1e+30
        %v1314 = vsel %vm952, %v1312, -inf
        %1315 = vmax.xlane.f32.xlu0 %v1314
        %v1316 = vpop.xlane.xlu0 %1315
        %v1317 = vsel %vm952, %v1313, -inf
        %1318 = vmax.xlane.f32.xlu0 %v1317
        %v1319 = vpop.xlane.xlu0 %1318
        %v1320 = vsub.f32 %v1312, %v1316
        %v1321 = vsub.f32 %v1313, %v1319
        %v1322 = vmul.f32 %v1320, 1.442695
        %v1323 = vpow.pop %v1322
        %v1324 = vmul.f32 %v1321, 1.442695
        %v1325 = vpow.pop %v1324
        %v1326 = vsel %vm952, %v1323, 0.0
        %1327 = vadd.xlane.f32.xlu0 %v1326
        %v1328 = vpop.xlane.xlu0 %1327
        %v1329 = vsel %vm952, %v1325, 0.0
        %1330 = vadd.xlane.f32.xlu0 %v1329
        %v1331 = vpop.xlane.xlu0 %1330
        %v1332 = vsel %vm952, %v1323, -inf
        %1333 = vmax.xlane.f32.xlu0 %v1332
        %v1334 = vpop.xlane.xlu0 %1333
        %v1335 = vsel %vm952, %v1325, -inf
        %1336 = vmax.xlane.f32.xlu0 %v1335
        %v1337 = vpop.xlane.xlu0 %1336
        %v1338 = vadd.f32 %v1334, 0.0
        %v1339 = vadd.f32 %v1337, 0.0
        %vm1340 = vcmp.eq.f32.partialorder %v1323, %v1334
        %vm1341 = vcmp.eq.f32.partialorder %v1325, %v1337
        %v1342 = vsel %vm1340, -1.0, %v1323
        %v1343 = vsel %vm1341, -1.0, %v1325
        %v1344 = vsel %vm952, %v1342, -inf
        %1345 = vmax.xlane.f32.xlu0 %v1344
        %v1346 = vpop.xlane.xlu0 %1345
        %v1347 = vsel %vm952, %v1343, -inf
        %1348 = vmax.xlane.f32.xlu0 %v1347
        %v1349 = vpop.xlane.xlu0 %1348
        %v1350 = vadd.f32 %v1338, %v1346
        %v1351 = vadd.f32 %v1339, %v1349
        %vm1352 = vcmp.eq.f32.partialorder %v1342, %v1346
        %vm1353 = vcmp.eq.f32.partialorder %v1343, %v1349
        %v1354 = vsel %vm1352, -1.0, %v1342
        %v1355 = vsel %vm1353, -1.0, %v1343
        %v1356 = vsel %vm952, %v1354, -inf
        %1357 = vmax.xlane.f32.xlu0 %v1356
        %v1358 = vpop.xlane.xlu0 %1357
        %v1359 = vsel %vm952, %v1355, -inf
        %1360 = vmax.xlane.f32.xlu0 %v1359
        %v1361 = vpop.xlane.xlu0 %1360
        %v1362 = vadd.f32 %v1350, %v1358
        %v1363 = vadd.f32 %v1351, %v1361
        %vm1364 = vcmp.eq.f32.partialorder %v1354, %v1358
        %vm1365 = vcmp.eq.f32.partialorder %v1355, %v1361
        %v1366 = vsel %vm1364, -1.0, %v1354
        %v1367 = vsel %vm1365, -1.0, %v1355
        %v1368 = vsel %vm952, %v1366, -inf
        %1369 = vmax.xlane.f32.xlu0 %v1368
        %v1370 = vpop.xlane.xlu0 %1369
        %v1371 = vsel %vm952, %v1367, -inf
        %1372 = vmax.xlane.f32.xlu0 %v1371
        %v1373 = vpop.xlane.xlu0 %1372
        %v1374 = vadd.f32 %v1362, %v1370
        %v1375 = vadd.f32 %v1363, %v1373
        %vm1376 = vcmp.eq.f32.partialorder %v1366, %v1370
        %vm1377 = vcmp.eq.f32.partialorder %v1367, %v1373
        %v1378 = vsel %vm1376, -1.0, %v1366
        %v1379 = vsel %vm1377, -1.0, %v1367
        %v1380 = vsel %vm952, %v1378, -inf
        %1381 = vmax.xlane.f32.xlu0 %v1380
        %v1382 = vpop.xlane.xlu0 %1381
        %v1383 = vsel %vm952, %v1379, -inf
        %1384 = vmax.xlane.f32.xlu0 %v1383
        %v1385 = vpop.xlane.xlu0 %1384
        %v1386 = vadd.f32 %v1374, %v1382
        %v1387 = vadd.f32 %v1375, %v1385
        %v1388 = vmul.f32 %v1328, 0.1
        %v1389 = vmul.f32 %v1331, 0.1
        %vm1390 = vcmp.gt.f32.partialorder %v1386, %v1388
        %vm1391 = vcmp.gt.f32.partialorder %v1387, %v1389
        %v1392 = vsel %vm1390, 1, 0
        %v1393 = vsel %vm1391, 1, 0
        %vm1394 = vcmp.eq.s32.totalorder %v1392, 1
        %vm1395 = vcmp.eq.s32.totalorder %v1393, 1
        %vm1396 = vmor %vm838, %vm1394
        %vm1397 = vmor %vm838, %vm1395
        %v1398 = vsel %vm1396, -1e+30, %v1237
        %v1399 = vsel %vm1397, -1e+30, %v1307
        %v1400 = vsel %vm952, %v1398, -inf
        %1401 = vmax.xlane.f32.xlu0 %v1400
        %v1402 = vpop.xlane.xlu0 %1401
        %v1403 = vsel %vm952, %v1399, -inf
        %1404 = vmax.xlane.f32.xlu0 %v1403
        %v1405 = vpop.xlane.xlu0 %1404
        %v1406 = vmax.f32 %v1316, %v1402
        %v1407 = vmax.f32 %v1319, %v1405
        %v1408 = vsub.f32 %v1398, %v1406
        %v1409 = vsub.f32 %v1399, %v1407
        %v1410 = vmul.f32 %v1408, 1.442695
        %v1411 = vpow.pop %v1410
        %v1412 = vmul.f32 %v1409, 1.442695
        %v1413 = vpow.pop %v1412
        %v1414 = vsub.f32 %v1316, %v1406
        %v1415 = vsub.f32 %v1319, %v1407
        %v1416 = vmul.f32 %v1414, 1.442695
        %v1417 = vpow.pop %v1416
        %v1418 = vmul.f32 %v1415, 1.442695
        %v1419 = vpow.pop %v1418
        %v1420 = vmul.f32 %v1323, %v1417
        %v1421 = vmul.f32 %v1325, %v1419
        %v1422 = vadd.f32 %v1411, %v1420
        %v1423 = vadd.f32 %v1413, %v1421
        %v1424 = vsel %vm952, %v1411, 0.0
        %1425 = vadd.xlane.f32.xlu0 %v1424
        %v1426 = vpop.xlane.xlu0 %1425
        %v1427 = vsel %vm952, %v1413, 0.0
        %1428 = vadd.xlane.f32.xlu0 %v1427
        %v1429 = vpop.xlane.xlu0 %1428
        %v1430 = vmul.f32 %v1328, %v1417
        %v1431 = vmul.f32 %v1331, %v1419
        %v1432 = vadd.f32 %v1426, %v1430
        %v1433 = vadd.f32 %v1429, %v1431
        %v1434 = vrcp.pop %v1432
        %v1435 = vrcp.pop %v1433
        %v1436 = vmul.f32 %v1422, %v1434
        %v1437 = vmul.f32 %v1423, %v1435
        %v1438 = vpack.c.bf16 %v1436, %v1436
        %v1439 = vpack.c.bf16 %v1437, %v1437
        %1444 = vrot.lane.b32.xlu0 %v828, 120
        %v1445 = vpop.permute.xlu0 %1444
        %1446 = vrot.lane.b32.xlu0 %v829, 120
        %v1447 = vpop.permute.xlu0 %1446
        %1448 = vrot.lane.b32.xlu0 %v830, 120
        %v1449 = vpop.permute.xlu0 %1448
        %1450 = vrot.lane.b32.xlu0 %v831, 120
        %v1451 = vpop.permute.xlu0 %1450
        %v1456 = vsel %vm952, %v1438, 0
        %v1459 = vsel %vm1082, %v1451, 0
        %1461 = vmatprep.subr.bf16.mxu0 0
        %1462 = vmatpush1.bf16.msra.mxu0 %v1445
        %1463 = vmatprep.subr.bf16.mxu0 0
        %1464 = vmatpush1.bf16.msra.mxu0 %v1447
        %1465 = vmatprep.subr.bf16.mxu0 0
        %1466 = vmatpush1.bf16.msra.mxu0 %v1449
        %1467 = vmatprep.subr.bf16.mxu0 0
        %1468 = vmatpush1.bf16.msra.mxu0 %v1459
        %1469 = vmatprep.subr.bf16.mxu0 0
        %1470 = vmatpush1.bf16.msra.mxu0 0
        %1471 = vmatprep.subr.bf16.mxu0 0
        %1472 = vmatpush1.bf16.msra.mxu0 0
        %1473 = vmatprep.subr.bf16.mxu0 0
        %1474 = vmatpush1.bf16.msra.mxu0 0
        %1475 = vmatprep.subr.bf16.mxu0 0
        %1476 = vmatpush1.bf16.msra.mxu0 0
        %1477 = vmatprep.subr.bf16.mxu0 0
        %1478 = vmatpush1.bf16.msra.mxu0 0
        %1479 = vmatprep.subr.bf16.mxu0 0
        %1480 = vmatpush1.bf16.msra.mxu0 0
        %1481 = vmatprep.subr.bf16.mxu0 0
        %1482 = vmatpush1.bf16.msra.mxu0 0
        %1483 = vmatprep.subr.bf16.mxu0 0
        %1484 = vmatpush1.bf16.msra.mxu0 0
        %1485 = vmatprep.subr.bf16.mxu0 0
        %1486 = vmatpush1.bf16.msra.mxu0 0
        %1487 = vmatprep.subr.bf16.mxu0 0
        %1488 = vmatpush1.bf16.msra.mxu0 0
        %1489 = vmatprep.subr.bf16.mxu0 0
        %1490 = vmatpush1.bf16.msra.mxu0 0
        %1491 = vmatprep.subr.bf16.mxu0 0
        %1492 = vmatpush1.bf16.msra.mxu0 0
        %1493 = vmatprep.mubr.bf16.mxu0 0
        %1494 = vmatmul.mubr.bf16.gmra.mrb[0].mxu0 %v1456
        %v1495 = vpop.f32.mrb[0].mxu0
        %v1496 = vadd.f32 0.0, %v1495
        %v1497 = vpop.f32.mrb[0].mxu0
        %v1498 = vpop.f32.mrb[0].mxu0
        %v1499 = vpop.f32.mrb[0].mxu0
        %1500 = vdwg.mxu0
        %1505 = vrot.lane.b32.xlu0 %v832, 120
        %v1506 = vpop.permute.xlu0 %1505
        %1507 = vrot.lane.b32.xlu0 %v833, 120
        %v1508 = vpop.permute.xlu0 %1507
        %1509 = vrot.lane.b32.xlu0 %v834, 120
        %v1510 = vpop.permute.xlu0 %1509
        %1511 = vrot.lane.b32.xlu0 %v835, 120
        %v1512 = vpop.permute.xlu0 %1511
        %v1517 = vsel %vm952, %v1439, 0
        %v1520 = vsel %vm1082, %v1512, 0
        %1522 = vmatprep.subr.bf16.mxu0 0
        %1523 = vmatpush1.bf16.msra.mxu0 %v1506
        %1524 = vmatprep.subr.bf16.mxu0 0
        %1525 = vmatpush1.bf16.msra.mxu0 %v1508
        %1526 = vmatprep.subr.bf16.mxu0 0
        %1527 = vmatpush1.bf16.msra.mxu0 %v1510
        %1528 = vmatprep.subr.bf16.mxu0 0
        %1529 = vmatpush1.bf16.msra.mxu0 %v1520
        %1530 = vmatprep.subr.bf16.mxu0 0
        %1531 = vmatpush1.bf16.msra.mxu0 0
        %1532 = vmatprep.subr.bf16.mxu0 0
        %1533 = vmatpush1.bf16.msra.mxu0 0
        %1534 = vmatprep.subr.bf16.mxu0 0
        %1535 = vmatpush1.bf16.msra.mxu0 0
        %1536 = vmatprep.subr.bf16.mxu0 0
        %1537 = vmatpush1.bf16.msra.mxu0 0
        %1538 = vmatprep.subr.bf16.mxu0 0
        %1539 = vmatpush1.bf16.msra.mxu0 0
        %1540 = vmatprep.subr.bf16.mxu0 0
        %1541 = vmatpush1.bf16.msra.mxu0 0
        %1542 = vmatprep.subr.bf16.mxu0 0
        %1543 = vmatpush1.bf16.msra.mxu0 0
        %1544 = vmatprep.subr.bf16.mxu0 0
        %1545 = vmatpush1.bf16.msra.mxu0 0
        %1546 = vmatprep.subr.bf16.mxu0 0
        %1547 = vmatpush1.bf16.msra.mxu0 0
        %1548 = vmatprep.subr.bf16.mxu0 0
        %1549 = vmatpush1.bf16.msra.mxu0 0
        %1550 = vmatprep.subr.bf16.mxu0 0
        %1551 = vmatpush1.bf16.msra.mxu0 0
        %1552 = vmatprep.subr.bf16.mxu0 0
        %1553 = vmatpush1.bf16.msra.mxu0 0
        %1554 = vmatprep.mubr.bf16.mxu0 0
        %1555 = vmatmul.mubr.bf16.gmra.mrb[0].mxu0 %v1517
        %v1556 = vpop.f32.mrb[0].mxu0
        %v1557 = vadd.f32 0.0, %v1556
        %v1558 = vpop.f32.mrb[0].mxu0
        %v1559 = vpop.f32.mrb[0].mxu0
        %v1560 = vpop.f32.mrb[0].mxu0
        %1561 = vdwg.mxu0
        %1562 = vrot.lane.b32.xlu0 %v552, 112
        %v1563 = vpop.permute.xlu0 %1562
        %1564 = vrot.lane.b32.xlu0 %v687, 112
        %v1565 = vpop.permute.xlu0 %1564
        %1566 = vrot.lane.b32.xlu0 %v688, 112
        %v1567 = vpop.permute.xlu0 %1566
        %1568 = vrot.lane.b32.xlu0 %v689, 112
        %v1569 = vpop.permute.xlu0 %1568
        %1570 = vrot.lane.b32.xlu0 %v690, 112
        %v1571 = vpop.permute.xlu0 %1570
        %v1573 = vsel %vm839, %v1563, 0
        %v1576 = vsel %vm839, %v1565, 0
        %v1579 = vsel %vm839, %v1567, 0
        %v1582 = vsel %vm839, %v1569, 0
        %v1585 = vsel %vm839, %v1571, 0
        %1587 = vmatprep.subr.bf16.mxu0 0
        %1588 = vmatpush1.bf16.xpose.msra.mxu0 %v1576
        %1589 = vmatprep.subr.bf16.mxu0 0
        %1590 = vmatpush1.bf16.xpose.msra.mxu0 %v1579
        %1591 = vmatprep.subr.bf16.mxu0 0
        %1592 = vmatpush1.bf16.xpose.msra.mxu0 %v1582
        %1593 = vmatprep.subr.bf16.mxu0 0
        %1594 = vmatpush1.bf16.xpose.msra.mxu0 %v1585
        %1595 = vmatprep.subr.bf16.mxu0 0
        %1596 = vmatpush1.bf16.xpose.msra.mxu0 0
        %1597 = vmatprep.subr.bf16.mxu0 0
        %1598 = vmatpush1.bf16.xpose.msra.mxu0 0
        %1599 = vmatprep.subr.bf16.mxu0 0
        %1600 = vmatpush1.bf16.xpose.msra.mxu0 0
        %1601 = vmatprep.subr.bf16.mxu0 0
        %1602 = vmatpush1.bf16.xpose.msra.mxu0 0
        %1603 = vmatprep.subr.bf16.mxu0 0
        %1604 = vmatpush1.bf16.xpose.msra.mxu0 0
        %1605 = vmatprep.subr.bf16.mxu0 0
        %1606 = vmatpush1.bf16.xpose.msra.mxu0 0
        %1607 = vmatprep.subr.bf16.mxu0 0
        %1608 = vmatpush1.bf16.xpose.msra.mxu0 0
        %1609 = vmatprep.subr.bf16.mxu0 0
        %1610 = vmatpush1.bf16.xpose.msra.mxu0 0
        %1611 = vmatprep.subr.bf16.mxu0 0
        %1612 = vmatpush1.bf16.xpose.msra.mxu0 0
        %1613 = vmatprep.subr.bf16.mxu0 0
        %1614 = vmatpush1.bf16.xpose.msra.mxu0 0
        %1615 = vmatprep.subr.bf16.mxu0 0
        %1616 = vmatpush1.bf16.xpose.msra.mxu0 0
        %1617 = vmatprep.subr.bf16.mxu0 0
        %1618 = vmatpush1.bf16.xpose.msra.mxu0 0
        %1619 = vmatprep.mubr.bf16.mxu0 0
        %1620 = vmatmul.mubr.bf16.gmra.mrb[0].mxu0 %v1573
        %v1621 = vpop.f32.mrb[0].mxu0
        %v1622 = vadd.f32 0.0, %v1621
        %v1623 = vpop.f32.mrb[0].mxu0
        %v1624 = vpop.f32.mrb[0].mxu0
        %v1625 = vpop.f32.mrb[0].mxu0
        %1626 = vdwg.mxu0
        %1627 = vrot.lane.b32.xlu0 %v553, 112
        %v1628 = vpop.permute.xlu0 %1627
        %1629 = vrot.lane.b32.xlu0 %v691, 112
        %v1630 = vpop.permute.xlu0 %1629
        %1631 = vrot.lane.b32.xlu0 %v692, 112
        %v1632 = vpop.permute.xlu0 %1631
        %1633 = vrot.lane.b32.xlu0 %v693, 112
        %v1634 = vpop.permute.xlu0 %1633
        %1635 = vrot.lane.b32.xlu0 %v694, 112
        %v1636 = vpop.permute.xlu0 %1635
        %v1638 = vsel %vm839, %v1628, 0
        %v1641 = vsel %vm839, %v1630, 0
        %v1644 = vsel %vm839, %v1632, 0
        %v1647 = vsel %vm839, %v1634, 0
        %v1650 = vsel %vm839, %v1636, 0
        %1652 = vmatprep.subr.bf16.mxu0 0
        %1653 = vmatpush1.bf16.xpose.msra.mxu0 %v1641
        %1654 = vmatprep.subr.bf16.mxu0 0
        %1655 = vmatpush1.bf16.xpose.msra.mxu0 %v1644
        %1656 = vmatprep.subr.bf16.mxu0 0
        %1657 = vmatpush1.bf16.xpose.msra.mxu0 %v1647
        %1658 = vmatprep.subr.bf16.mxu0 0
        %1659 = vmatpush1.bf16.xpose.msra.mxu0 %v1650
        %1660 = vmatprep.subr.bf16.mxu0 0
        %1661 = vmatpush1.bf16.xpose.msra.mxu0 0
        %1662 = vmatprep.subr.bf16.mxu0 0
        %1663 = vmatpush1.bf16.xpose.msra.mxu0 0
        %1664 = vmatprep.subr.bf16.mxu0 0
        %1665 = vmatpush1.bf16.xpose.msra.mxu0 0
        %1666 = vmatprep.subr.bf16.mxu0 0
        %1667 = vmatpush1.bf16.xpose.msra.mxu0 0
        %1668 = vmatprep.subr.bf16.mxu0 0
        %1669 = vmatpush1.bf16.xpose.msra.mxu0 0
        %1670 = vmatprep.subr.bf16.mxu0 0
        %1671 = vmatpush1.bf16.xpose.msra.mxu0 0
        %1672 = vmatprep.subr.bf16.mxu0 0
        %1673 = vmatpush1.bf16.xpose.msra.mxu0 0
        %1674 = vmatprep.subr.bf16.mxu0 0
        %1675 = vmatpush1.bf16.xpose.msra.mxu0 0
        %1676 = vmatprep.subr.bf16.mxu0 0
        %1677 = vmatpush1.bf16.xpose.msra.mxu0 0
        %1678 = vmatprep.subr.bf16.mxu0 0
        %1679 = vmatpush1.bf16.xpose.msra.mxu0 0
        %1680 = vmatprep.subr.bf16.mxu0 0
        %1681 = vmatpush1.bf16.xpose.msra.mxu0 0
        %1682 = vmatprep.subr.bf16.mxu0 0
        %1683 = vmatpush1.bf16.xpose.msra.mxu0 0
        %1684 = vmatprep.mubr.bf16.mxu0 0
        %1685 = vmatmul.mubr.bf16.gmra.mrb[0].mxu0 %v1638
        %v1686 = vpop.f32.mrb[0].mxu0
        %v1687 = vadd.f32 0.0, %v1686
        %v1688 = vpop.f32.mrb[0].mxu0
        %v1689 = vpop.f32.mrb[0].mxu0
        %v1690 = vpop.f32.mrb[0].mxu0
        %1691 = vdwg.mxu0
        %v1692 = vsel %vm838, %v1622, -1e+30
        %v1693 = vsel %vm838, %v1687, -1e+30
        %v1694 = vsel %vm952, %v1692, -inf
        %1695 = vmax.xlane.f32.xlu0 %v1694
        %v1696 = vpop.xlane.xlu0 %1695
        %v1697 = vsel %vm952, %v1693, -inf
        %1698 = vmax.xlane.f32.xlu0 %v1697
        %v1699 = vpop.xlane.xlu0 %1698
        %v1700 = vsub.f32 %v1692, %v1696
        %v1701 = vsub.f32 %v1693, %v1699
        %v1702 = vmul.f32 %v1700, 1.442695
        %v1703 = vpow.pop %v1702
        %v1704 = vmul.f32 %v1701, 1.442695
        %v1705 = vpow.pop %v1704
        %v1706 = vsel %vm952, %v1703, 0.0
        %1707 = vadd.xlane.f32.xlu0 %v1706
        %v1708 = vpop.xlane.xlu0 %1707
        %v1709 = vsel %vm952, %v1705, 0.0
        %1710 = vadd.xlane.f32.xlu0 %v1709
        %v1711 = vpop.xlane.xlu0 %1710
        %v1712 = vsel %vm952, %v1703, -inf
        %1713 = vmax.xlane.f32.xlu0 %v1712
        %v1714 = vpop.xlane.xlu0 %1713
        %v1715 = vsel %vm952, %v1705, -inf
        %1716 = vmax.xlane.f32.xlu0 %v1715
        %v1717 = vpop.xlane.xlu0 %1716
        %v1718 = vadd.f32 %v1714, 0.0
        %v1719 = vadd.f32 %v1717, 0.0
        %vm1720 = vcmp.eq.f32.partialorder %v1703, %v1714
        %vm1721 = vcmp.eq.f32.partialorder %v1705, %v1717
        %v1722 = vsel %vm1720, -1.0, %v1703
        %v1723 = vsel %vm1721, -1.0, %v1705
        %v1724 = vsel %vm952, %v1722, -inf
        %1725 = vmax.xlane.f32.xlu0 %v1724
        %v1726 = vpop.xlane.xlu0 %1725
        %v1727 = vsel %vm952, %v1723, -inf
        %1728 = vmax.xlane.f32.xlu0 %v1727
        %v1729 = vpop.xlane.xlu0 %1728
        %v1730 = vadd.f32 %v1718, %v1726
        %v1731 = vadd.f32 %v1719, %v1729
        %vm1732 = vcmp.eq.f32.partialorder %v1722, %v1726
        %vm1733 = vcmp.eq.f32.partialorder %v1723, %v1729
        %v1734 = vsel %vm1732, -1.0, %v1722
        %v1735 = vsel %vm1733, -1.0, %v1723
        %v1736 = vsel %vm952, %v1734, -inf
        %1737 = vmax.xlane.f32.xlu0 %v1736
        %v1738 = vpop.xlane.xlu0 %1737
        %v1739 = vsel %vm952, %v1735, -inf
        %1740 = vmax.xlane.f32.xlu0 %v1739
        %v1741 = vpop.xlane.xlu0 %1740
        %v1742 = vadd.f32 %v1730, %v1738
        %v1743 = vadd.f32 %v1731, %v1741
        %vm1744 = vcmp.eq.f32.partialorder %v1734, %v1738
        %vm1745 = vcmp.eq.f32.partialorder %v1735, %v1741
        %v1746 = vsel %vm1744, -1.0, %v1734
        %v1747 = vsel %vm1745, -1.0, %v1735
        %v1748 = vsel %vm952, %v1746, -inf
        %1749 = vmax.xlane.f32.xlu0 %v1748
        %v1750 = vpop.xlane.xlu0 %1749
        %v1751 = vsel %vm952, %v1747, -inf
        %1752 = vmax.xlane.f32.xlu0 %v1751
        %v1753 = vpop.xlane.xlu0 %1752
        %v1754 = vadd.f32 %v1742, %v1750
        %v1755 = vadd.f32 %v1743, %v1753
        %vm1756 = vcmp.eq.f32.partialorder %v1746, %v1750
        %vm1757 = vcmp.eq.f32.partialorder %v1747, %v1753
        %v1758 = vsel %vm1756, -1.0, %v1746
        %v1759 = vsel %vm1757, -1.0, %v1747
        %v1760 = vsel %vm952, %v1758, -inf
        %1761 = vmax.xlane.f32.xlu0 %v1760
        %v1762 = vpop.xlane.xlu0 %1761
        %v1763 = vsel %vm952, %v1759, -inf
        %1764 = vmax.xlane.f32.xlu0 %v1763
        %v1765 = vpop.xlane.xlu0 %1764
        %v1766 = vadd.f32 %v1754, %v1762
        %v1767 = vadd.f32 %v1755, %v1765
        %v1768 = vmul.f32 %v1708, 0.1
        %v1769 = vmul.f32 %v1711, 0.1
        %vm1770 = vcmp.gt.f32.partialorder %v1766, %v1768
        %vm1771 = vcmp.gt.f32.partialorder %v1767, %v1769
        %v1772 = vsel %vm1770, 1, 0
        %v1773 = vsel %vm1771, 1, 0
        %vm1774 = vcmp.eq.s32.totalorder %v1772, 1
        %vm1775 = vcmp.eq.s32.totalorder %v1773, 1
        %vm1776 = vmor %vm838, %vm1774
        %vm1777 = vmor %vm838, %vm1775
        %v1778 = vsel %vm1776, -1e+30, %v1622
        %v1779 = vsel %vm1777, -1e+30, %v1687
        %v1780 = vsel %vm952, %v1778, -inf
        %1781 = vmax.xlane.f32.xlu0 %v1780
        %v1782 = vpop.xlane.xlu0 %1781
        %v1783 = vsel %vm952, %v1779, -inf
        %1784 = vmax.xlane.f32.xlu0 %v1783
        %v1785 = vpop.xlane.xlu0 %1784
        %v1786 = vmax.f32 %v1696, %v1782
        %v1787 = vmax.f32 %v1699, %v1785
        %v1788 = vsub.f32 %v1778, %v1786
        %v1789 = vsub.f32 %v1779, %v1787
        %v1790 = vmul.f32 %v1788, 1.442695
        %v1791 = vpow.pop %v1790
        %v1792 = vmul.f32 %v1789, 1.442695
        %v1793 = vpow.pop %v1792
        %v1794 = vsub.f32 %v1696, %v1786
        %v1795 = vsub.f32 %v1699, %v1787
        %v1796 = vmul.f32 %v1794, 1.442695
        %v1797 = vpow.pop %v1796
        %v1798 = vmul.f32 %v1795, 1.442695
        %v1799 = vpow.pop %v1798
        %v1800 = vmul.f32 %v1703, %v1797
        %v1801 = vmul.f32 %v1705, %v1799
        %v1802 = vadd.f32 %v1791, %v1800
        %v1803 = vadd.f32 %v1793, %v1801
        %v1804 = vsel %vm952, %v1791, 0.0
        %1805 = vadd.xlane.f32.xlu0 %v1804
        %v1806 = vpop.xlane.xlu0 %1805
        %v1807 = vsel %vm952, %v1793, 0.0
        %1808 = vadd.xlane.f32.xlu0 %v1807
        %v1809 = vpop.xlane.xlu0 %1808
        %v1810 = vmul.f32 %v1708, %v1797
        %v1811 = vmul.f32 %v1711, %v1799
        %v1812 = vadd.f32 %v1806, %v1810
        %v1813 = vadd.f32 %v1809, %v1811
        %v1814 = vrcp.pop %v1812
        %v1815 = vrcp.pop %v1813
        %v1816 = vmul.f32 %v1802, %v1814
        %v1817 = vmul.f32 %v1803, %v1815
        %v1818 = vpack.c.bf16 %v1816, %v1816
        %v1819 = vpack.c.bf16 %v1817, %v1817
        %1820 = vrot.lane.b32.xlu0 %v828, 112
        %v1821 = vpop.permute.xlu0 %1820
        %1822 = vrot.lane.b32.xlu0 %v829, 112
        %v1823 = vpop.permute.xlu0 %1822
        %1824 = vrot.lane.b32.xlu0 %v830, 112
        %v1825 = vpop.permute.xlu0 %1824
        %1826 = vrot.lane.b32.xlu0 %v831, 112
        %v1827 = vpop.permute.xlu0 %1826
        %v1832 = vsel %vm952, %v1818, 0
        %v1835 = vsel %vm1082, %v1827, 0
        %1837 = vmatprep.subr.bf16.mxu0 0
        %1838 = vmatpush1.bf16.msra.mxu0 %v1821
        %1839 = vmatprep.subr.bf16.mxu0 0
        %1840 = vmatpush1.bf16.msra.mxu0 %v1823
        %1841 = vmatprep.subr.bf16.mxu0 0
        %1842 = vmatpush1.bf16.msra.mxu0 %v1825
        %1843 = vmatprep.subr.bf16.mxu0 0
        %1844 = vmatpush1.bf16.msra.mxu0 %v1835
        %1845 = vmatprep.subr.bf16.mxu0 0
        %1846 = vmatpush1.bf16.msra.mxu0 0
        %1847 = vmatprep.subr.bf16.mxu0 0
        %1848 = vmatpush1.bf16.msra.mxu0 0
        %1849 = vmatprep.subr.bf16.mxu0 0
        %1850 = vmatpush1.bf16.msra.mxu0 0
        %1851 = vmatprep.subr.bf16.mxu0 0
        %1852 = vmatpush1.bf16.msra.mxu0 0
        %1853 = vmatprep.subr.bf16.mxu0 0
        %1854 = vmatpush1.bf16.msra.mxu0 0
        %1855 = vmatprep.subr.bf16.mxu0 0
        %1856 = vmatpush1.bf16.msra.mxu0 0
        %1857 = vmatprep.subr.bf16.mxu0 0
        %1858 = vmatpush1.bf16.msra.mxu0 0
        %1859 = vmatprep.subr.bf16.mxu0 0
        %1860 = vmatpush1.bf16.msra.mxu0 0
        %1861 = vmatprep.subr.bf16.mxu0 0
        %1862 = vmatpush1.bf16.msra.mxu0 0
        %1863 = vmatprep.subr.bf16.mxu0 0
        %1864 = vmatpush1.bf16.msra.mxu0 0
        %1865 = vmatprep.subr.bf16.mxu0 0
        %1866 = vmatpush1.bf16.msra.mxu0 0
        %1867 = vmatprep.subr.bf16.mxu0 0
        %1868 = vmatpush1.bf16.msra.mxu0 0
        %1869 = vmatprep.mubr.bf16.mxu0 0
        %1870 = vmatmul.mubr.bf16.gmra.mrb[0].mxu0 %v1832
        %v1871 = vpop.f32.mrb[0].mxu0
        %v1872 = vadd.f32 0.0, %v1871
        %v1873 = vpop.f32.mrb[0].mxu0
        %v1874 = vpop.f32.mrb[0].mxu0
        %v1875 = vpop.f32.mrb[0].mxu0
        %1876 = vdwg.mxu0
        %1877 = vrot.lane.b32.xlu0 %v832, 112
        %v1878 = vpop.permute.xlu0 %1877
        %1879 = vrot.lane.b32.xlu0 %v833, 112
        %v1880 = vpop.permute.xlu0 %1879
        %1881 = vrot.lane.b32.xlu0 %v834, 112
        %v1882 = vpop.permute.xlu0 %1881
        %1883 = vrot.lane.b32.xlu0 %v835, 112
        %v1884 = vpop.permute.xlu0 %1883
        %v1889 = vsel %vm952, %v1819, 0
        %v1892 = vsel %vm1082, %v1884, 0
        %1894 = vmatprep.subr.bf16.mxu0 0
        %1895 = vmatpush1.bf16.msra.mxu0 %v1878
        %1896 = vmatprep.subr.bf16.mxu0 0
        %1897 = vmatpush1.bf16.msra.mxu0 %v1880
        %1898 = vmatprep.subr.bf16.mxu0 0
        %1899 = vmatpush1.bf16.msra.mxu0 %v1882
        %1900 = vmatprep.subr.bf16.mxu0 0
        %1901 = vmatpush1.bf16.msra.mxu0 %v1892
        %1902 = vmatprep.subr.bf16.mxu0 0
        %1903 = vmatpush1.bf16.msra.mxu0 0
        %1904 = vmatprep.subr.bf16.mxu0 0
        %1905 = vmatpush1.bf16.msra.mxu0 0
        %1906 = vmatprep.subr.bf16.mxu0 0
        %1907 = vmatpush1.bf16.msra.mxu0 0
        %1908 = vmatprep.subr.bf16.mxu0 0
        %1909 = vmatpush1.bf16.msra.mxu0 0
        %1910 = vmatprep.subr.bf16.mxu0 0
        %1911 = vmatpush1.bf16.msra.mxu0 0
        %1912 = vmatprep.subr.bf16.mxu0 0
        %1913 = vmatpush1.bf16.msra.mxu0 0
        %1914 = vmatprep.subr.bf16.mxu0 0
        %1915 = vmatpush1.bf16.msra.mxu0 0
        %1916 = vmatprep.subr.bf16.mxu0 0
        %1917 = vmatpush1.bf16.msra.mxu0 0
        %1918 = vmatprep.subr.bf16.mxu0 0
        %1919 = vmatpush1.bf16.msra.mxu0 0
        %1920 = vmatprep.subr.bf16.mxu0 0
        %1921 = vmatpush1.bf16.msra.mxu0 0
        %1922 = vmatprep.subr.bf16.mxu0 0
        %1923 = vmatpush1.bf16.msra.mxu0 0
        %1924 = vmatprep.subr.bf16.mxu0 0
        %1925 = vmatpush1.bf16.msra.mxu0 0
        %1926 = vmatprep.mubr.bf16.mxu0 0
        %1927 = vmatmul.mubr.bf16.gmra.mrb[0].mxu0 %v1889
        %v1928 = vpop.f32.mrb[0].mxu0
        %v1929 = vadd.f32 0.0, %v1928
        %v1930 = vpop.f32.mrb[0].mxu0
        %v1931 = vpop.f32.mrb[0].mxu0
        %v1932 = vpop.f32.mrb[0].mxu0
        %1933 = vdwg.mxu0
        %1934 = vrot.lane.b32.xlu0 %v552, 104
        %v1935 = vpop.permute.xlu0 %1934
        %1936 = vrot.lane.b32.xlu0 %v687, 104
        %v1937 = vpop.permute.xlu0 %1936
        %1938 = vrot.lane.b32.xlu0 %v688, 104
        %v1939 = vpop.permute.xlu0 %1938
        %1940 = vrot.lane.b32.xlu0 %v689, 104
        %v1941 = vpop.permute.xlu0 %1940
        %1942 = vrot.lane.b32.xlu0 %v690, 104
        %v1943 = vpop.permute.xlu0 %1942
        %v1945 = vsel %vm839, %v1935, 0
        %v1948 = vsel %vm839, %v1937, 0
        %v1951 = vsel %vm839, %v1939, 0
        %v1954 = vsel %vm839, %v1941, 0
        %v1957 = vsel %vm839, %v1943, 0
        %1959 = vmatprep.subr.bf16.mxu0 0
        %1960 = vmatpush1.bf16.xpose.msra.mxu0 %v1948
        %1961 = vmatprep.subr.bf16.mxu0 0
        %1962 = vmatpush1.bf16.xpose.msra.mxu0 %v1951
        %1963 = vmatprep.subr.bf16.mxu0 0
        %1964 = vmatpush1.bf16.xpose.msra.mxu0 %v1954
        %1965 = vmatprep.subr.bf16.mxu0 0
        %1966 = vmatpush1.bf16.xpose.msra.mxu0 %v1957
        %1967 = vmatprep.subr.bf16.mxu0 0
        %1968 = vmatpush1.bf16.xpose.msra.mxu0 0
        %1969 = vmatprep.subr.bf16.mxu0 0
        %1970 = vmatpush1.bf16.xpose.msra.mxu0 0
        %1971 = vmatprep.subr.bf16.mxu0 0
        %1972 = vmatpush1.bf16.xpose.msra.mxu0 0
        %1973 = vmatprep.subr.bf16.mxu0 0
        %1974 = vmatpush1.bf16.xpose.msra.mxu0 0
        %1975 = vmatprep.subr.bf16.mxu0 0
        %1976 = vmatpush1.bf16.xpose.msra.mxu0 0
        %1977 = vmatprep.subr.bf16.mxu0 0
        %1978 = vmatpush1.bf16.xpose.msra.mxu0 0
        %1979 = vmatprep.subr.bf16.mxu0 0
        %1980 = vmatpush1.bf16.xpose.msra.mxu0 0
        %1981 = vmatprep.subr.bf16.mxu0 0
        %1982 = vmatpush1.bf16.xpose.msra.mxu0 0
        %1983 = vmatprep.subr.bf16.mxu0 0
        %1984 = vmatpush1.bf16.xpose.msra.mxu0 0
        %1985 = vmatprep.subr.bf16.mxu0 0
        %1986 = vmatpush1.bf16.xpose.msra.mxu0 0
        %1987 = vmatprep.subr.bf16.mxu0 0
        %1988 = vmatpush1.bf16.xpose.msra.mxu0 0
        %1989 = vmatprep.subr.bf16.mxu0 0
        %1990 = vmatpush1.bf16.xpose.msra.mxu0 0
        %1991 = vmatprep.mubr.bf16.mxu0 0
        %1992 = vmatmul.mubr.bf16.gmra.mrb[0].mxu0 %v1945
        %v1993 = vpop.f32.mrb[0].mxu0
        %v1994 = vadd.f32 0.0, %v1993
        %v1995 = vpop.f32.mrb[0].mxu0
        %v1996 = vpop.f32.mrb[0].mxu0
        %v1997 = vpop.f32.mrb[0].mxu0
        %1998 = vdwg.mxu0
        %1999 = vrot.lane.b32.xlu0 %v553, 104
        %v2000 = vpop.permute.xlu0 %1999
        %2001 = vrot.lane.b32.xlu0 %v691, 104
        %v2002 = vpop.permute.xlu0 %2001
        %2003 = vrot.lane.b32.xlu0 %v692, 104
        %v2004 = vpop.permute.xlu0 %2003
        %2005 = vrot.lane.b32.xlu0 %v693, 104
        %v2006 = vpop.permute.xlu0 %2005
        %2007 = vrot.lane.b32.xlu0 %v694, 104
        %v2008 = vpop.permute.xlu0 %2007
        %v2010 = vsel %vm839, %v2000, 0
        %v2013 = vsel %vm839, %v2002, 0
        %v2016 = vsel %vm839, %v2004, 0
        %v2019 = vsel %vm839, %v2006, 0
        %v2022 = vsel %vm839, %v2008, 0
        %2024 = vmatprep.subr.bf16.mxu0 0
        %2025 = vmatpush1.bf16.xpose.msra.mxu0 %v2013
        %2026 = vmatprep.subr.bf16.mxu0 0
        %2027 = vmatpush1.bf16.xpose.msra.mxu0 %v2016
        %2028 = vmatprep.subr.bf16.mxu0 0
        %2029 = vmatpush1.bf16.xpose.msra.mxu0 %v2019
        %2030 = vmatprep.subr.bf16.mxu0 0
        %2031 = vmatpush1.bf16.xpose.msra.mxu0 %v2022
        %2032 = vmatprep.subr.bf16.mxu0 0
        %2033 = vmatpush1.bf16.xpose.msra.mxu0 0
        %2034 = vmatprep.subr.bf16.mxu0 0
        %2035 = vmatpush1.bf16.xpose.msra.mxu0 0
        %2036 = vmatprep.subr.bf16.mxu0 0
        %2037 = vmatpush1.bf16.xpose.msra.mxu0 0
        %2038 = vmatprep.subr.bf16.mxu0 0
        %2039 = vmatpush1.bf16.xpose.msra.mxu0 0
        %2040 = vmatprep.subr.bf16.mxu0 0
        %2041 = vmatpush1.bf16.xpose.msra.mxu0 0
        %2042 = vmatprep.subr.bf16.mxu0 0
        %2043 = vmatpush1.bf16.xpose.msra.mxu0 0
        %2044 = vmatprep.subr.bf16.mxu0 0
        %2045 = vmatpush1.bf16.xpose.msra.mxu0 0
        %2046 = vmatprep.subr.bf16.mxu0 0
        %2047 = vmatpush1.bf16.xpose.msra.mxu0 0
        %2048 = vmatprep.subr.bf16.mxu0 0
        %2049 = vmatpush1.bf16.xpose.msra.mxu0 0
        %2050 = vmatprep.subr.bf16.mxu0 0
        %2051 = vmatpush1.bf16.xpose.msra.mxu0 0
        %2052 = vmatprep.subr.bf16.mxu0 0
        %2053 = vmatpush1.bf16.xpose.msra.mxu0 0
        %2054 = vmatprep.subr.bf16.mxu0 0
        %2055 = vmatpush1.bf16.xpose.msra.mxu0 0
        %2056 = vmatprep.mubr.bf16.mxu0 0
        %2057 = vmatmul.mubr.bf16.gmra.mrb[0].mxu0 %v2010
        %v2058 = vpop.f32.mrb[0].mxu0
        %v2059 = vadd.f32 0.0, %v2058
        %v2060 = vpop.f32.mrb[0].mxu0
        %v2061 = vpop.f32.mrb[0].mxu0
        %v2062 = vpop.f32.mrb[0].mxu0
        %2063 = vdwg.mxu0
        %v2064 = vsel %vm838, %v1994, -1e+30
        %v2065 = vsel %vm838, %v2059, -1e+30
        %v2066 = vsel %vm952, %v2064, -inf
        %2067 = vmax.xlane.f32.xlu0 %v2066
        %v2068 = vpop.xlane.xlu0 %2067
        %v2069 = vsel %vm952, %v2065, -inf
        %2070 = vmax.xlane.f32.xlu0 %v2069
        %v2071 = vpop.xlane.xlu0 %2070
        %v2072 = vsub.f32 %v2064, %v2068
        %v2073 = vsub.f32 %v2065, %v2071
        %v2074 = vmul.f32 %v2072, 1.442695
        %v2075 = vpow.pop %v2074
        %v2076 = vmul.f32 %v2073, 1.442695
        %v2077 = vpow.pop %v2076
        %v2078 = vsel %vm952, %v2075, 0.0
        %2079 = vadd.xlane.f32.xlu0 %v2078
        %v2080 = vpop.xlane.xlu0 %2079
        %v2081 = vsel %vm952, %v2077, 0.0
        %2082 = vadd.xlane.f32.xlu0 %v2081
        %v2083 = vpop.xlane.xlu0 %2082
        %v2084 = vsel %vm952, %v2075, -inf
        %2085 = vmax.xlane.f32.xlu0 %v2084
        %v2086 = vpop.xlane.xlu0 %2085
        %v2087 = vsel %vm952, %v2077, -inf
        %2088 = vmax.xlane.f32.xlu0 %v2087
        %v2089 = vpop.xlane.xlu0 %2088
        %v2090 = vadd.f32 %v2086, 0.0
        %v2091 = vadd.f32 %v2089, 0.0
        %vm2092 = vcmp.eq.f32.partialorder %v2075, %v2086
        %vm2093 = vcmp.eq.f32.partialorder %v2077, %v2089
        %v2094 = vsel %vm2092, -1.0, %v2075
        %v2095 = vsel %vm2093, -1.0, %v2077
        %v2096 = vsel %vm952, %v2094, -inf
        %2097 = vmax.xlane.f32.xlu0 %v2096
        %v2098 = vpop.xlane.xlu0 %2097
        %v2099 = vsel %vm952, %v2095, -inf
        %2100 = vmax.xlane.f32.xlu0 %v2099
        %v2101 = vpop.xlane.xlu0 %2100
        %v2102 = vadd.f32 %v2090, %v2098
        %v2103 = vadd.f32 %v2091, %v2101
        %vm2104 = vcmp.eq.f32.partialorder %v2094, %v2098
        %vm2105 = vcmp.eq.f32.partialorder %v2095, %v2101
        %v2106 = vsel %vm2104, -1.0, %v2094
        %v2107 = vsel %vm2105, -1.0, %v2095
        %v2108 = vsel %vm952, %v2106, -inf
        %2109 = vmax.xlane.f32.xlu0 %v2108
        %v2110 = vpop.xlane.xlu0 %2109
        %v2111 = vsel %vm952, %v2107, -inf
        %2112 = vmax.xlane.f32.xlu0 %v2111
        %v2113 = vpop.xlane.xlu0 %2112
        %v2114 = vadd.f32 %v2102, %v2110
        %v2115 = vadd.f32 %v2103, %v2113
        %vm2116 = vcmp.eq.f32.partialorder %v2106, %v2110
        %vm2117 = vcmp.eq.f32.partialorder %v2107, %v2113
        %v2118 = vsel %vm2116, -1.0, %v2106
        %v2119 = vsel %vm2117, -1.0, %v2107
        %v2120 = vsel %vm952, %v2118, -inf
        %2121 = vmax.xlane.f32.xlu0 %v2120
        %v2122 = vpop.xlane.xlu0 %2121
        %v2123 = vsel %vm952, %v2119, -inf
        %2124 = vmax.xlane.f32.xlu0 %v2123
        %v2125 = vpop.xlane.xlu0 %2124
        %v2126 = vadd.f32 %v2114, %v2122
        %v2127 = vadd.f32 %v2115, %v2125
        %vm2128 = vcmp.eq.f32.partialorder %v2118, %v2122
        %vm2129 = vcmp.eq.f32.partialorder %v2119, %v2125
        %v2130 = vsel %vm2128, -1.0, %v2118
        %v2131 = vsel %vm2129, -1.0, %v2119
        %v2132 = vsel %vm952, %v2130, -inf
        %2133 = vmax.xlane.f32.xlu0 %v2132
        %v2134 = vpop.xlane.xlu0 %2133
        %v2135 = vsel %vm952, %v2131, -inf
        %2136 = vmax.xlane.f32.xlu0 %v2135
        %v2137 = vpop.xlane.xlu0 %2136
        %v2138 = vadd.f32 %v2126, %v2134
        %v2139 = vadd.f32 %v2127, %v2137
        %v2140 = vmul.f32 %v2080, 0.1
        %v2141 = vmul.f32 %v2083, 0.1
        %vm2142 = vcmp.gt.f32.partialorder %v2138, %v2140
        %vm2143 = vcmp.gt.f32.partialorder %v2139, %v2141
        %v2144 = vsel %vm2142, 1, 0
        %v2145 = vsel %vm2143, 1, 0
        %vm2146 = vcmp.eq.s32.totalorder %v2144, 1
        %vm2147 = vcmp.eq.s32.totalorder %v2145, 1
        %vm2148 = vmor %vm838, %vm2146
        %vm2149 = vmor %vm838, %vm2147
        %v2150 = vsel %vm2148, -1e+30, %v1994
        %v2151 = vsel %vm2149, -1e+30, %v2059
        %v2152 = vsel %vm952, %v2150, -inf
        %2153 = vmax.xlane.f32.xlu0 %v2152
        %v2154 = vpop.xlane.xlu0 %2153
        %v2155 = vsel %vm952, %v2151, -inf
        %2156 = vmax.xlane.f32.xlu0 %v2155
        %v2157 = vpop.xlane.xlu0 %2156
        %v2158 = vmax.f32 %v2068, %v2154
        %v2159 = vmax.f32 %v2071, %v2157
        %v2160 = vsub.f32 %v2150, %v2158
        %v2161 = vsub.f32 %v2151, %v2159
        %v2162 = vmul.f32 %v2160, 1.442695
        %v2163 = vpow.pop %v2162
        %v2164 = vmul.f32 %v2161, 1.442695
        %v2165 = vpow.pop %v2164
        %v2166 = vsub.f32 %v2068, %v2158
        %v2167 = vsub.f32 %v2071, %v2159
        %v2168 = vmul.f32 %v2166, 1.442695
        %v2169 = vpow.pop %v2168
        %v2170 = vmul.f32 %v2167, 1.442695
        %v2171 = vpow.pop %v2170
        %v2172 = vmul.f32 %v2075, %v2169
        %v2173 = vmul.f32 %v2077, %v2171
        %v2174 = vadd.f32 %v2163, %v2172
        %v2175 = vadd.f32 %v2165, %v2173
        %v2176 = vsel %vm952, %v2163, 0.0
        %2177 = vadd.xlane.f32.xlu0 %v2176
        %v2178 = vpop.xlane.xlu0 %2177
        %v2179 = vsel %vm952, %v2165, 0.0
        %2180 = vadd.xlane.f32.xlu0 %v2179
        %v2181 = vpop.xlane.xlu0 %2180
        %v2182 = vmul.f32 %v2080, %v2169
        %v2183 = vmul.f32 %v2083, %v2171
        %v2184 = vadd.f32 %v2178, %v2182
        %v2185 = vadd.f32 %v2181, %v2183
        %v2186 = vrcp.pop %v2184
        %v2187 = vrcp.pop %v2185
        %v2188 = vmul.f32 %v2174, %v2186
        %v2189 = vmul.f32 %v2175, %v2187
        %v2190 = vpack.c.bf16 %v2188, %v2188
        %v2191 = vpack.c.bf16 %v2189, %v2189
        %2192 = vrot.lane.b32.xlu0 %v828, 104
        %v2193 = vpop.permute.xlu0 %2192
        %2194 = vrot.lane.b32.xlu0 %v829, 104
        %v2195 = vpop.permute.xlu0 %2194
        %2196 = vrot.lane.b32.xlu0 %v830, 104
        %v2197 = vpop.permute.xlu0 %2196
        %2198 = vrot.lane.b32.xlu0 %v831, 104
        %v2199 = vpop.permute.xlu0 %2198
        %v2204 = vsel %vm952, %v2190, 0
        %v2207 = vsel %vm1082, %v2199, 0
        %2209 = vmatprep.subr.bf16.mxu0 0
        %2210 = vmatpush1.bf16.msra.mxu0 %v2193
        %2211 = vmatprep.subr.bf16.mxu0 0
        %2212 = vmatpush1.bf16.msra.mxu0 %v2195
        %2213 = vmatprep.subr.bf16.mxu0 0
        %2214 = vmatpush1.bf16.msra.mxu0 %v2197
        %2215 = vmatprep.subr.bf16.mxu0 0
        %2216 = vmatpush1.bf16.msra.mxu0 %v2207
        %2217 = vmatprep.subr.bf16.mxu0 0
        %2218 = vmatpush1.bf16.msra.mxu0 0
        %2219 = vmatprep.subr.bf16.mxu0 0
        %2220 = vmatpush1.bf16.msra.mxu0 0
        %2221 = vmatprep.subr.bf16.mxu0 0
        %2222 = vmatpush1.bf16.msra.mxu0 0
        %2223 = vmatprep.subr.bf16.mxu0 0
        %2224 = vmatpush1.bf16.msra.mxu0 0
        %2225 = vmatprep.subr.bf16.mxu0 0
        %2226 = vmatpush1.bf16.msra.mxu0 0
        %2227 = vmatprep.subr.bf16.mxu0 0
        %2228 = vmatpush1.bf16.msra.mxu0 0
        %2229 = vmatprep.subr.bf16.mxu0 0
        %2230 = vmatpush1.bf16.msra.mxu0 0
        %2231 = vmatprep.subr.bf16.mxu0 0
        %2232 = vmatpush1.bf16.msra.mxu0 0
        %2233 = vmatprep.subr.bf16.mxu0 0
        %2234 = vmatpush1.bf16.msra.mxu0 0
        %2235 = vmatprep.subr.bf16.mxu0 0
        %2236 = vmatpush1.bf16.msra.mxu0 0
        %2237 = vmatprep.subr.bf16.mxu0 0
        %2238 = vmatpush1.bf16.msra.mxu0 0
        %2239 = vmatprep.subr.bf16.mxu0 0
        %2240 = vmatpush1.bf16.msra.mxu0 0
        %2241 = vmatprep.mubr.bf16.mxu0 0
        %2242 = vmatmul.mubr.bf16.gmra.mrb[0].mxu0 %v2204
        %v2243 = vpop.f32.mrb[0].mxu0
        %v2244 = vadd.f32 0.0, %v2243
        %v2245 = vpop.f32.mrb[0].mxu0
        %v2246 = vpop.f32.mrb[0].mxu0
        %v2247 = vpop.f32.mrb[0].mxu0
        %2248 = vdwg.mxu0
        %2249 = vrot.lane.b32.xlu0 %v832, 104
        %v2250 = vpop.permute.xlu0 %2249
        %2251 = vrot.lane.b32.xlu0 %v833, 104
        %v2252 = vpop.permute.xlu0 %2251
        %2253 = vrot.lane.b32.xlu0 %v834, 104
        %v2254 = vpop.permute.xlu0 %2253
        %2255 = vrot.lane.b32.xlu0 %v835, 104
        %v2256 = vpop.permute.xlu0 %2255
        %v2261 = vsel %vm952, %v2191, 0
        %v2264 = vsel %vm1082, %v2256, 0
        %2266 = vmatprep.subr.bf16.mxu0 0
        %2267 = vmatpush1.bf16.msra.mxu0 %v2250
        %2268 = vmatprep.subr.bf16.mxu0 0
        %2269 = vmatpush1.bf16.msra.mxu0 %v2252
        %2270 = vmatprep.subr.bf16.mxu0 0
        %2271 = vmatpush1.bf16.msra.mxu0 %v2254
        %2272 = vmatprep.subr.bf16.mxu0 0
        %2273 = vmatpush1.bf16.msra.mxu0 %v2264
        %2274 = vmatprep.subr.bf16.mxu0 0
        %2275 = vmatpush1.bf16.msra.mxu0 0
        %2276 = vmatprep.subr.bf16.mxu0 0
        %2277 = vmatpush1.bf16.msra.mxu0 0
        %2278 = vmatprep.subr.bf16.mxu0 0
        %2279 = vmatpush1.bf16.msra.mxu0 0
        %2280 = vmatprep.subr.bf16.mxu0 0
        %2281 = vmatpush1.bf16.msra.mxu0 0
        %2282 = vmatprep.subr.bf16.mxu0 0
        %2283 = vmatpush1.bf16.msra.mxu0 0
        %2284 = vmatprep.subr.bf16.mxu0 0
        %2285 = vmatpush1.bf16.msra.mxu0 0
        %2286 = vmatprep.subr.bf16.mxu0 0
        %2287 = vmatpush1.bf16.msra.mxu0 0
        %2288 = vmatprep.subr.bf16.mxu0 0
        %2289 = vmatpush1.bf16.msra.mxu0 0
        %2290 = vmatprep.subr.bf16.mxu0 0
        %2291 = vmatpush1.bf16.msra.mxu0 0
        %2292 = vmatprep.subr.bf16.mxu0 0
        %2293 = vmatpush1.bf16.msra.mxu0 0
        %2294 = vmatprep.subr.bf16.mxu0 0
        %2295 = vmatpush1.bf16.msra.mxu0 0
        %2296 = vmatprep.subr.bf16.mxu0 0
        %2297 = vmatpush1.bf16.msra.mxu0 0
        %2298 = vmatprep.mubr.bf16.mxu0 0
        %2299 = vmatmul.mubr.bf16.gmra.mrb[0].mxu0 %v2261
        %v2300 = vpop.f32.mrb[0].mxu0
        %v2301 = vadd.f32 0.0, %v2300
        %v2302 = vpop.f32.mrb[0].mxu0
        %v2303 = vpop.f32.mrb[0].mxu0
        %v2304 = vpop.f32.mrb[0].mxu0
        %2305 = vdwg.mxu0
        %2308 = vrot.lane.b32.xlu0 %v1496, 8
        %v2309 = vpop.permute.xlu0 %2308
        %2310 = vrot.lane.b32.xlu0 %v1557, 8
        %v2311 = vpop.permute.xlu0 %2310
        %2316 = vrot.lane.b32.xlu0 %v1872, 16
        %v2317 = vpop.permute.xlu0 %2316
        %2318 = vrot.lane.b32.xlu0 %v1929, 16
        %v2319 = vpop.permute.xlu0 %2318
        %2324 = vrot.lane.b32.xlu0 %v2244, 24
        %v2325 = vpop.permute.xlu0 %2324
        %2326 = vrot.lane.b32.xlu0 %v2301, 24
        %v2327 = vpop.permute.xlu0 %2326
        %v2330 = vsel %vm839, %v1121, %v2309
        %v2331 = vsel %vm839, %v1167, %v2311
        %vm2332 = vcmask 130048
        %v2333 = vsel %vm2332, %v2330, %v2317
        %v2334 = vsel %vm2332, %v2331, %v2319
        %vm2335 = vcmask 195584
        %v2336 = vsel %vm2335, %v2333, %v2325
        %v2337 = vsel %vm2335, %v2334, %v2327
        %v2338 = vpack.c.bf16 %v2337, %v2336
        %v2339 = vld [vmem:[%s9] sm:$0xf]
        %v2340 = vld [vmem:[%s9 + $0x4] sm:$0xf]
        %v2341 = vld [vmem:[%s9 + $0x8] sm:$0xf]
        %v2342 = vld [vmem:[%s9 + $0xc] sm:$0xf]
        %v2343 = vld [vmem:[%s10] sm:$0x1]
        %v2345 = vlaneseq
        %v2346 = vshrl.u32 %v2345, 7
        %v2347 = vsub.s32 0, %v2346
        %v2348 = vrot.slane %v2343, %v2347
        %v2354 = vunpack.c.l.b16 %v2339
        %v2355 = vunpack.c.l.b16 %v2340
        %v2356 = vunpack.c.l.b16 %v2341
        %v2357 = vunpack.c.l.b16 %v2342
        %v2358 = vpack.c.b16 %v2355, %v2354
        %v2359 = vpack.c.b16 %v2357, %v2356
        %v2363 = vsel %vm507, %v2338, 0
        %2365 = vmatprep.subr.bf16.mxu0 0
        %2366 = vmatpush1.bf16.msra.mxu0 %v2358
        %2367 = vmatprep.subr.bf16.mxu0 0
        %2368 = vmatpush1.bf16.msra.mxu0 %v2359
        %2369 = vmatprep.subr.bf16.mxu0 0
        %2370 = vmatpush1.bf16.msra.mxu0 0
        %2371 = vmatprep.subr.bf16.mxu0 0
        %2372 = vmatpush1.bf16.msra.mxu0 0
        %2373 = vmatprep.subr.bf16.mxu0 0
        %2374 = vmatpush1.bf16.msra.mxu0 0
        %2375 = vmatprep.subr.bf16.mxu0 0
        %2376 = vmatpush1.bf16.msra.mxu0 0
        %2377 = vmatprep.subr.bf16.mxu0 0
        %2378 = vmatpush1.bf16.msra.mxu0 0
        %2379 = vmatprep.subr.bf16.mxu0 0
        %2380 = vmatpush1.bf16.msra.mxu0 0
        %2381 = vmatprep.subr.bf16.mxu0 0
        %2382 = vmatpush1.bf16.msra.mxu0 0
        %2383 = vmatprep.subr.bf16.mxu0 0
        %2384 = vmatpush1.bf16.msra.mxu0 0
        %2385 = vmatprep.subr.bf16.mxu0 0
        %2386 = vmatpush1.bf16.msra.mxu0 0
        %2387 = vmatprep.subr.bf16.mxu0 0
        %2388 = vmatpush1.bf16.msra.mxu0 0
        %2389 = vmatprep.subr.bf16.mxu0 0
        %2390 = vmatpush1.bf16.msra.mxu0 0
        %2391 = vmatprep.subr.bf16.mxu0 0
        %2392 = vmatpush1.bf16.msra.mxu0 0
        %2393 = vmatprep.subr.bf16.mxu0 0
        %2394 = vmatpush1.bf16.msra.mxu0 0
        %2395 = vmatprep.subr.bf16.mxu0 0
        %2396 = vmatpush1.bf16.msra.mxu0 0
        %2397 = vmatprep.mubr.bf16.mxu0 0
        %2398 = vmatmul.mubr.bf16.gmra.mrb[0].mxu0 %v2363
        %v2399 = vpop.f32.mrb[0].mxu0
        %v2400 = vadd.f32 %v2348, %v2399
        %v2401 = vpop.f32.mrb[0].mxu0
        %v2402 = vpop.f32.mrb[0].mxu0
        %v2403 = vadd.f32 %v2348, %v2402
        %v2404 = vpop.f32.mrb[0].mxu0
        %2405 = vdwg.mxu0
        %2406 = vst.msk [vmem:[%s416] sm:$0xff] %vm507, %v2400
        %2407 = vst.msk [vmem:[%s416 + $0x8] sm:$0xff] %vm507, %v2403
        %s2408 = sand.u32 %s279, 1
        %s2409 = scalar_lea.sflag [#allocation3], %s2408
        %s2410 = sand.u32 %s279, 1
        %s2411 = smul.addr %s2410, 16
        %s2412 = scalar_lea.vmem [#allocation2], %s2411
        // Predicated region
        $region65: #{tpu_custom_call.1} parent=63 // pred_check
          %p2413 = pneg %p289
        $region66: #{tpu_custom_call.1} parent=63 // pred_check_branch
          %2415 = sbr.rel (%p2413) target = $region68
        $region67: #{tpu_custom_call.1} parent=63 // pred_region
          %s2416 = smul.u32 2, %s25
          %s2418 = ssub.s32 256, 256
          %2419 = vsyncadd %s2409, %s2418
          %s2420 = smul.addr %s2416, 128
          %s2421 = scalar_lea.hbm %s11, %s2420
          %s2422 = sshll.u32 %s2412, 4
          %s2423 = int_to_ptr.vmem [resolvable:$true] %s2422
          %2428 = dma.vmem_to_hbm [thread:$0]  %s2423, 256, %s2421, %s2409, 128, 128, 8
        $region68: #{tpu_custom_call.1} parent=63 // pred_fallthru
          _
      $region64: #{tpu_custom_call.1} parent=5 // pred_fallthru
        _
      %p2429 = scmp.le.s32.totalorder 2, %s20
      // Predicated region
      $region69: #{tpu_custom_call.1} parent=5 // pred_check
        %p2430 = pneg %p2429
      $region70: #{tpu_custom_call.1} parent=5 // pred_check_branch
        %2432 = sbr.rel (%p2430) target = $region72
      $region71: #{tpu_custom_call.1} parent=5 // pred_region
        %s2433 = ssub.s32 %s20, 2
        // Predicated region
        $region73: #{tpu_custom_call.1} parent=71 // pred_check
          %p2434 = pneg %p295
        $region74: #{tpu_custom_call.1} parent=71 // pred_check_branch
          %2436 = sbr.rel (%p2434) target = $region76
        $region75: #{tpu_custom_call.1} parent=71 // pred_region
          %s2437 = sand.u32 %s280, 1
          %s2438 = scalar_lea.sflag [#allocation3], %s2437
          %s2439 = sand.u32 %s280, 1
          %s2440 = smul.addr %s2439, 16
          %s2441 = scalar_lea.vmem [#allocation2], %s2440
          %2442 = dma.done %s2438, 256
        $region76: #{tpu_custom_call.1} parent=71 // pred_fallthru
          _
      $region72: #{tpu_custom_call.1} parent=5 // pred_fallthru
        _
    $region6: #{tpu_custom_call.1} parent=1 // loop_footer
      %s24 = sadd.s32 1, %s20
    $region7: #{tpu_custom_call.1} parent=1 // loop_footer_branch
      %19 = sbr.rel target = $region3
    $region8: #{tpu_custom_call.1} parent=1 // loop_exit
      _
    %2443 = vsyncpa [#allocation3], 1
    %s2444 = scalar_lea.sflag [#allocation3], 1
    %2445 = vsyncpa %s2444, 1

</llo_original>
